<compile_context>
chip_gen: v5e
topology: v5e:2x2
jax: 0.10.0
libtpu: 0.0.40
codegen_flags: <defaults>
</compile_context>

<pallas_src>
import jax
import jax.numpy as jnp
from jax import lax
from jax.experimental import pallas as pl
from jax.experimental.pallas import tpu as pltpu


# ------------------------------- helpers ----------------------------------- #

def _rup(n, m):
    return ((n + m - 1) // m) * m


def _pad_to(x, shape):
    return jnp.pad(x, [(0, s - d) for d, s in zip(x.shape, shape)])


def _vmem_limit_bytes():
    """Generation-aware VMEM cap: ~75% of physical, <= 100 MiB.
    v5e/v6e (128 MiB physical) -> 96 MiB; v7x (64 MiB physical) -> 48 MiB."""
    cap = 64 * 1024 * 1024
    try:
        cap = int(pltpu.get_tpu_info().vmem_capacity_bytes)
    except Exception:
        pass
    return int(min(cap * 3 // 4, 100 * 1024 * 1024))


def _banded_conv_weights(conv_w, C, W, F, dtype=jnp.bfloat16):
    """(9C, F) conv weights -> (3, (W+2)*C, W*F) banded matrices M[dy] with
    M[dy][(x+dx)*C + c, x*F + f] = w[dy, dx, c, f], so a 3x3 'SAME' conv on a
    zero-padded NHWC row block becomes 3 dense MXU matmuls (weight-sized, not
    input-sized).  ~6x redundant zero-MACs, traded for ~9x less HBM traffic."""
    w4 = conv_w.reshape(3, 3, C, F).astype(jnp.float32)
    bands = []
    for dy in range(3):
        m = jnp.zeros(((W + 2) * C, W * F), jnp.float32)
        for dx in range(3):
            band = jnp.eye(W + 2, W, k=-dx, dtype=jnp.float32)  # 1 at (x+dx, x)
            m = m + jnp.einsum("ij,cf->icjf", band, w4[dy, dx]).reshape(
                (W + 2) * C, W * F)
        bands.append(m)
    return jnp.stack(bands).astype(dtype)


# ----------------------------- Pallas kernel -------------------------------- #

def _make_kernel(batch, hw, th):
    """Fused SimCLR forward.  `batch`/`hw` are the real (unpadded) batch and
    spatial sizes; `th` is the number of output image rows per grid step."""
    inv_hw = 1.0 / float(hw)
    inv_b = 1.0 / float(batch)

    def kernel(x_ref, m_ref, cb_ref, p_ref, w1_ref, b1_ref, g_ref, be_ref,
               w2_ref, b2_ref, o_ref, acc_ref):
        t = pl.program_id(0)

        @pl.when(t == 0)
        def _():
            acc_ref[...] = jnp.zeros_like(acc_ref)

        bp, _, wc2 = x_ref.shape          # (Bp, th+2, (W+2)*C)
        wf = acc_ref.shape[1]             # W*F

        # --- encoder conv3x3: 3 banded bf16 MXU matmuls (one per dy) ---
        xb = x_ref[...]                                           # bf16 halo tile
        act = None
        for dy in range(3):
            # static sublane-offset slice of the halo tile + collapse of the
            # leading dims (lane dim unchanged -> layout-free reshape).
            lhs = xb[:, dy:dy + th, :].reshape(bp * th, wc2)
            part = jnp.dot(lhs, m_ref[dy], preferred_element_type=jnp.float32)
            act = part if act is None else act + part
        act = jnp.maximum(act + cb_ref[...], 0.0)                 # (Bp*th, W*F) f32

        # --- global-avg-pool step 1: sum over this tile's image rows ---
        acc_ref[...] += jnp.sum(act.reshape(bp, th, wf), axis=1)

        # --- finalize: W-pooling + projection head, whole batch resident ---
        @pl.when(t == pl.num_programs(0) - 1)
        def _():
            # pool step 2: sum over W via one-hot (W*F, Fp) matmul, then scale.
            emb = jnp.dot(acc_ref[...], p_ref[...],
                          preferred_element_type=jnp.float32) * inv_hw
            # Linear -> BatchNorm1d (training batch stats) -> ReLU -> Linear
            h = jnp.dot(emb.astype(jnp.bfloat16), w1_ref[...],
                        preferred_element_type=jnp.float32) + b1_ref[...]
            row = lax.broadcasted_iota(jnp.int32, h.shape, 0)
            mask = (row < batch).astype(jnp.float32)    # drop padded batch rows
            mean = jnp.sum(h * mask, axis=0, keepdims=True) * inv_b
            cent = h - mean
            var = jnp.sum(cent * cent * mask, axis=0, keepdims=True) * inv_b
            hn = cent * lax.rsqrt(var + 1e-5) * g_ref[...] + be_ref[...]
            hn = jnp.maximum(hn, 0.0)
            o_ref[...] = jnp.dot(hn.astype(jnp.bfloat16), w2_ref[...],
                                 preferred_element_type=jnp.float32) + b2_ref[...]

    return kernel


# ------------------------------ JAX wrapper --------------------------------- #

def simclr_forward(x_nchw, params, tile_rows=None):
    B, C, H, W = x_nchw.shape
    F = params["conv_w"].shape[1]
    HID = params["w1"].shape[1]
    OUT = params["w2"].shape[1]

    Bp = _rup(B, 8)
    Fp = _rup(F, 128)     # TODO(synk): 256 alignment on v6e/v7x at production widths
    Hp = _rup(HID, 128)
    Op = _rup(OUT, 128)
    WC2 = (W + 2) * C
    WF = W * F

    if tile_rows is None:
        tile_rows = H      # toy sizes: one grid step; tiling only adds per-step cost
    assert H % tile_rows == 0, "H must be divisible by tile_rows"
    nt = H // tile_rows

    # input: NCHW -> NHWC, zero-pad batch->Bp and spatial by 1 (conv halo),
    # flatten (W+2, C) into the lane dim.  No 9x im2col, no K padding in HBM.
    x = jnp.transpose(x_nchw, (0, 2, 3, 1)).astype(jnp.float32)
    xp = jnp.pad(x, ((0, Bp - B), (1, 1), (1, 1), (0, 0)))
    xf = xp.reshape(Bp, H + 2, WC2).astype(jnp.bfloat16)
    # halo-duplicated row tiles (2 duplicated rows per tile) so plain BlockSpecs
    # express the overlapping windows; tile t = padded rows [t*tr, t*tr + tr + 2).
    tiles = jnp.stack(
        [xf[:, t * tile_rows: t * tile_rows + tile_rows + 2, :] for t in range(nt)],
        axis=0)                                       # (nt, Bp, tile_rows+2, WC2)

    m = _banded_conv_weights(params["conv_w"], C, W, F)              # (3, WC2, WF)
    cb = jnp.tile(params["conv_b"].astype(jnp.float32), (1, W))       # (1, WF)
    pool = _pad_to(jnp.tile(jnp.eye(F, dtype=jnp.float32), (W, 1)), (WF, Fp))
    w1 = _pad_to(params["w1"], (Fp, Hp)).astype(jnp.bfloat16)
    b1 = _pad_to(params["b1"], (1, Hp)).astype(jnp.float32)
    gm = _pad_to(params["gamma"], (1, Hp)).astype(jnp.float32)
    bt = _pad_to(params["beta"], (1, Hp)).astype(jnp.float32)
    w2 = _pad_to(params["w2"], (Hp, Op)).astype(jnp.bfloat16)
    b2 = _pad_to(params["b2"], (1, Op)).astype(jnp.float32)

    kernel = _make_kernel(B, H * W, tile_rows)
    const2 = lambda t: (0, 0)
    # TODO(synk): at production widths add pipeline_mode=pl.Buffered(1) to these
    # constant-index weight specs so they are single-buffered in VMEM.

    out_pad = pl.pallas_call(
        kernel,
        out_shape=jax.ShapeDtypeStruct((Bp, Op), jnp.float32),
        grid_spec=pltpu.PrefetchScalarGridSpec(
            num_scalar_prefetch=0,
            grid=(nt,),
            in_specs=[
                pl.BlockSpec((None, Bp, tile_rows + 2, WC2),
                             lambda t: (t, 0, 0, 0)),                 # halo row tile
                pl.BlockSpec((3, WC2, WF), lambda t: (0, 0, 0)),      # banded conv w
                pl.BlockSpec((1, WF), const2),                        # conv bias (tiled)
                pl.BlockSpec((WF, Fp), const2),                       # W-pooling one-hot
                pl.BlockSpec((Fp, Hp), const2),                       # w1
                pl.BlockSpec((1, Hp), const2),                        # b1
                pl.BlockSpec((1, Hp), const2),                        # gamma
                pl.BlockSpec((1, Hp), const2),                        # beta
                pl.BlockSpec((Hp, Op), const2),                       # w2
                pl.BlockSpec((1, Op), const2),                        # b2
            ],
            out_specs=pl.BlockSpec((Bp, Op), const2),
            scratch_shapes=[pltpu.VMEM((Bp, WF), jnp.float32)],       # pooled row-sum
        ),
        compiler_params=pltpu.CompilerParams(
            # row axis carries the pooled-sum accumulator -> must stay sequential.
            # TODO(synk): v7x 2-core split needs per-core partial sums instead.
            dimension_semantics=("arbitrary",),
            vmem_limit_bytes=_vmem_limit_bytes(),
        ),
    )(tiles, m, cb, pool, w1, b1, gm, bt, w2, b2)

    return out_pad[:B, :OUT]


# -------------------------- pure-JAX reference ------------------------------ #

def reference_forward(x_nchw, params):
    """Independent reference (lax.conv); bf16 MXU operands + f32 accumulation to
    match the kernel's numerics; BatchNorm in f32 with batch statistics."""
    B, C, H, W = x_nchw.shape
    F = params["conv_w"].shape[1]
    w_hwio = params["conv_w"].reshape(3, 3, C, F)            # (kh, kw, Cin, Cout)
    x_nhwc = jnp.transpose(x_nchw, (0, 2, 3, 1)).astype(jnp.float32)
    act = lax.conv_general_dilated(
        x_nhwc.astype(jnp.bfloat16), w_hwio.astype(jnp.bfloat16),
        window_strides=(1, 1), padding="SAME",
        dimension_numbers=("NHWC", "HWIO", "NHWC"),
        preferred_element_type=jnp.float32)
    act = jnp.maximum(act + params["conv_b"][0], 0.0)
    emb = act.reshape(B, H * W, F).mean(axis=1)

    h = jnp.dot(emb.astype(jnp.bfloat16), params["w1"].astype(jnp.bfloat16),
                preferred_element_type=jnp.float32) + params["b1"]
    mean = h.mean(axis=0, keepdims=True)
    var = ((h - mean) ** 2).mean(axis=0, keepdims=True)
    hn = (h - mean) * lax.rsqrt(var + 1e-5) * params["gamma"] + params["beta"]
    hn = jnp.maximum(hn, 0.0)
    return jnp.dot(hn.astype(jnp.bfloat16), params["w2"].astype(jnp.bfloat16),
                   preferred_element_type=jnp.float32) + params["b2"]


# ---------------------------------- main ------------------------------------ #

if __name__ == "__main__":
    B, C, H, W = 2, 4, 16, 16        # input images (NCHW, PyTorch convention)
    FEAT = 32                        # backbone.fc.in_features
    HID = 64                         # hid_dim
    OUT = 16                         # out_dim

    key = jax.random.PRNGKey(0)
    ks = jax.random.split(key, 9)

    params = {
        # conv weight stored in im2col layout (kh*kw*C, feat)
        "conv_w": 0.05 * jax.random.normal(ks[0], (9 * C, FEAT), jnp.float32),
        "conv_b": 0.05 * jax.random.normal(ks[1], (1, FEAT), jnp.float32),
        "w1":     0.05 * jax.random.normal(ks[2], (FEAT, HID), jnp.float32),
        "b1":     0.05 * jax.random.normal(ks[3], (1, HID), jnp.float32),
        "gamma":  1.0 + 0.05 * jax.random.normal(ks[4], (1, HID), jnp.float32),
        "beta":   0.05 * jax.random.normal(ks[5], (1, HID), jnp.float32),
        "w2":     0.05 * jax.random.normal(ks[6], (HID, OUT), jnp.float32),
        "b2":     0.05 * jax.random.normal(ks[7], (1, OUT), jnp.float32),
    }
    x = jax.random.normal(ks[8], (B, C, H, W), jnp.float32)

    ref = jax.block_until_ready(reference_forward(x, params))

    # default path: grid=(1,) full-slab (right answer at this toy H*W)
    out = jax.block_until_ready(simclr_forward(x, params))
    assert out.shape == (B, OUT), out.shape
    assert jnp.allclose(out, ref, atol=2e-3, rtol=2e-3), "mismatch (full-slab)"

    # row-tiled path: 2 halo-duplicated tiles, pooled sum carried in VMEM scratch
    out_tiled = jax.block_until_ready(simclr_forward(x, params, tile_rows=8))
    assert jnp.allclose(out_tiled, ref, atol=2e-3, rtol=2e-3), "mismatch (row-tiled)"

    print("KERNEL_OK")
</pallas_src>

<mosaic_0001>
module attributes {stable_mosaic.version = 11 : i64} {
  func.func @kernel(%arg0: i32, %arg1: memref<1x8x18x72xbf16, #tpu.memory_space<vmem>>, %arg2: memref<3x72x512xbf16, #tpu.memory_space<vmem>>, %arg3: memref<1x512xf32, #tpu.memory_space<vmem>>, %arg4: memref<512x128xf32, #tpu.memory_space<vmem>>, %arg5: memref<128x128xbf16, #tpu.memory_space<vmem>>, %arg6: memref<1x128xf32, #tpu.memory_space<vmem>>, %arg7: memref<1x128xf32, #tpu.memory_space<vmem>>, %arg8: memref<1x128xf32, #tpu.memory_space<vmem>>, %arg9: memref<128x128xbf16, #tpu.memory_space<vmem>>, %arg10: memref<1x128xf32, #tpu.memory_space<vmem>>, %arg11: memref<8x128xf32, #tpu.memory_space<vmem>>, %arg12: memref<8x512xf32, #tpu.memory_space<vmem>>) attributes {dimension_semantics = [#tpu.dimension_semantics<arbitrary>], iteration_bounds = array<i64: 1>, scalar_prefetch = 0 : i64, scratch_operands = 1 : i64, tpu.core_type = #tpu.core_type<tc>, window_params = [{transform_indices = @transform_0, window_bounds = array<i64: 1, 8, 18, 72>}, {pipeline_mode = #tpu.pipeline_mode<synchronous>, transform_indices = @transform_1, window_bounds = array<i64: 3, 72, 512>}, {pipeline_mode = #tpu.pipeline_mode<synchronous>, transform_indices = @transform_2, window_bounds = array<i64: 1, 512>}, {pipeline_mode = #tpu.pipeline_mode<synchronous>, transform_indices = @transform_3, window_bounds = array<i64: 512, 128>}, {pipeline_mode = #tpu.pipeline_mode<synchronous>, transform_indices = @transform_4, window_bounds = array<i64: 128, 128>}, {pipeline_mode = #tpu.pipeline_mode<synchronous>, transform_indices = @transform_5, window_bounds = array<i64: 1, 128>}, {pipeline_mode = #tpu.pipeline_mode<synchronous>, transform_indices = @transform_6, window_bounds = array<i64: 1, 128>}, {pipeline_mode = #tpu.pipeline_mode<synchronous>, transform_indices = @transform_7, window_bounds = array<i64: 1, 128>}, {pipeline_mode = #tpu.pipeline_mode<synchronous>, transform_indices = @transform_8, window_bounds = array<i64: 128, 128>}, {pipeline_mode = #tpu.pipeline_mode<synchronous>, transform_indices = @transform_9, window_bounds = array<i64: 1, 128>}, {pipeline_mode = #tpu.pipeline_mode<synchronous>, transform_indices = @transform_10, window_bounds = array<i64: 8, 128>}]} {
    %c0_i32 = arith.constant 0 : i32
    %0 = arith.cmpi eq, %arg0, %c0_i32 : i32
    %1 = arith.extui %0 : i1 to i32
    %c0_i32_0 = arith.constant 0 : i32
    %2 = arith.cmpi ne, %1, %c0_i32_0 : i32
    scf.if %2 {
      %cst_23 = arith.constant 0.000000e+00 : f32
      %35 = vector.broadcast %cst_23 : f32 to vector<8x512xf32>
      %c0_24 = arith.constant 0 : index
      %c0_25 = arith.constant 0 : index
      %36 = vector.load %arg12[%c0_24, %c0_25] : memref<8x512xf32, #tpu.memory_space<vmem>>, vector<8x512xf32>
      tpu.vector_store %arg12[%c0_24, %c0_25], %35 {strides = array<i32>} : memref<8x512xf32, #tpu.memory_space<vmem>>, vector<8x512xf32>,
    } else {
    }
    %c0 = arith.constant 0 : index
    %c0_1 = arith.constant 0 : index
    %c0_2 = arith.constant 0 : index
    %c0_3 = arith.constant 0 : index
    %3 = vector.load %arg1[%c0, %c0_1, %c0_2, %c0_3] : memref<1x8x18x72xbf16, #tpu.memory_space<vmem>>, vector<1x8x18x72xbf16>
    %4 = vector.shape_cast %3 : vector<1x8x18x72xbf16> to vector<8x18x72xbf16>
    %5 = vector.extract_strided_slice %4 {offsets = [0, 0, 0], sizes = [8, 16, 72], strides = [1, 1, 1]} : vector<8x18x72xbf16> to vector<8x16x72xbf16>
    %6 = vector.shape_cast %5 : vector<8x16x72xbf16> to vector<128x72xbf16>
    %c0_4 = arith.constant 0 : index
    %c0_5 = arith.constant 0 : index
    %c0_6 = arith.constant 0 : index
    %7 = vector.load %arg2[%c0_4, %c0_5, %c0_6] : memref<3x72x512xbf16, #tpu.memory_space<vmem>>, vector<1x72x512xbf16>
    %8 = vector.shape_cast %7 : vector<1x72x512xbf16> to vector<72x512xbf16>
    %cst = arith.constant dense<0.000000e+00> : vector<128x512xf32>
    %9 = tpu.matmul %6, %8, %cst {dimension_numbers = #tpu.dot_dimension_numbers<[1], [0], [0], [1], [0, 0, 1, 1], [], []>} : vector<128x72xbf16>, vector<72x512xbf16>, vector<128x512xf32> -> vector<128x512xf32>
    %10 = vector.extract_strided_slice %4 {offsets = [0, 1, 0], sizes = [8, 16, 72], strides = [1, 1, 1]} : vector<8x18x72xbf16> to vector<8x16x72xbf16>
    %11 = vector.shape_cast %10 : vector<8x16x72xbf16> to vector<128x72xbf16>
    %c1 = arith.constant 1 : index
    %c0_7 = arith.constant 0 : index
    %c0_8 = arith.constant 0 : index
    %12 = vector.load %arg2[%c1, %c0_7, %c0_8] : memref<3x72x512xbf16, #tpu.memory_space<vmem>>, vector<1x72x512xbf16>
    %13 = vector.shape_cast %12 : vector<1x72x512xbf16> to vector<72x512xbf16>
    %cst_9 = arith.constant dense<0.000000e+00> : vector<128x512xf32>
    %14 = tpu.matmul %11, %13, %cst_9 {dimension_numbers = #tpu.dot_dimension_numbers<[1], [0], [0], [1], [0, 0, 1, 1], [], []>} : vector<128x72xbf16>, vector<72x512xbf16>, vector<128x512xf32> -> vector<128x512xf32>
    %15 = arith.addf %9, %14 : vector<128x512xf32>
    %16 = vector.extract_strided_slice %4 {offsets = [0, 2, 0], sizes = [8, 16, 72], strides = [1, 1, 1]} : vector<8x18x72xbf16> to vector<8x16x72xbf16>
    %17 = vector.shape_cast %16 : vector<8x16x72xbf16> to vector<128x72xbf16>
    %c2 = arith.constant 2 : index
    %c0_10 = arith.constant 0 : index
    %c0_11 = arith.constant 0 : index
    %18 = vector.load %arg2[%c2, %c0_10, %c0_11] : memref<3x72x512xbf16, #tpu.memory_space<vmem>>, vector<1x72x512xbf16>
    %19 = vector.shape_cast %18 : vector<1x72x512xbf16> to vector<72x512xbf16>
    %cst_12 = arith.constant dense<0.000000e+00> : vector<128x512xf32>
    %20 = tpu.matmul %17, %19, %cst_12 {dimension_numbers = #tpu.dot_dimension_numbers<[1], [0], [0], [1], [0, 0, 1, 1], [], []>} : vector<128x72xbf16>, vector<72x512xbf16>, vector<128x512xf32> -> vector<128x512xf32>
    %21 = arith.addf %15, %20 : vector<128x512xf32>
    %c0_13 = arith.constant 0 : index
    %c0_14 = arith.constant 0 : index
    %22 = vector.load %arg3[%c0_13, %c0_14] : memref<1x512xf32, #tpu.memory_space<vmem>>, vector<1x512xf32>
    %23 = vector.broadcast %22 : vector<1x512xf32> to vector<128x512xf32>
    %24 = arith.addf %21, %23 : vector<128x512xf32>
    %cst_15 = arith.constant 0.000000e+00 : f32
    %25 = vector.broadcast %cst_15 : f32 to vector<128x512xf32>
    %26 = arith.maximumf %24, %25 : vector<128x512xf32>
    %c0_16 = arith.constant 0 : index
    %c0_17 = arith.constant 0 : index
    %27 = vector.load %arg12[%c0_16, %c0_17] : memref<8x512xf32, #tpu.memory_space<vmem>>, vector<8x512xf32>
    %28 = vector.shape_cast %26 : vector<128x512xf32> to vector<8x16x512xf32>
    %cst_18 = arith.constant dense<0.000000e+00> : vector<8x512xf32>
    %29 = vector.multi_reduction <add>, %28, %cst_18 [1] : vector<8x16x512xf32> to vector<8x512xf32>
    %30 = arith.addf %27, %29 : vector<8x512xf32>
    %c0_19 = arith.constant 0 : index
    %c0_20 = arith.constant 0 : index
    %31 = vector.load %arg12[%c0_19, %c0_20] : memref<8x512xf32, #tpu.memory_space<vmem>>, vector<8x512xf32>
    tpu.vector_store %arg12[%c0_19, %c0_20], %30 {strides = array<i32>} : memref<8x512xf32, #tpu.memory_space<vmem>>, vector<8x512xf32>,
    %c0_i32_21 = arith.constant 0 : i32
    %32 = arith.cmpi eq, %arg0, %c0_i32_21 : i32
    %33 = arith.extui %32 : i1 to i32
    %c0_i32_22 = arith.constant 0 : i32
    %34 = arith.cmpi ne, %33, %c0_i32_22 : i32
    scf.if %34 {
      %c0_23 = arith.constant 0 : index
      %c0_24 = arith.constant 0 : index
      %35 = vector.load %arg12[%c0_23, %c0_24] : memref<8x512xf32, #tpu.memory_space<vmem>>, vector<8x512xf32>
      %c0_25 = arith.constant 0 : index
      %c0_26 = arith.constant 0 : index
      %36 = vector.load %arg4[%c0_25, %c0_26] : memref<512x128xf32, #tpu.memory_space<vmem>>, vector<512x128xf32>
      %cst_27 = arith.constant dense<0.000000e+00> : vector<8x128xf32>
      %37 = tpu.matmul %35, %36, %cst_27 {dimension_numbers = #tpu.dot_dimension_numbers<[1], [0], [0], [1], [0, 0, 1, 1], [], []>} : vector<8x512xf32>, vector<512x128xf32>, vector<8x128xf32> -> vector<8x128xf32>
      %cst_28 = arith.constant 3.906250e-03 : f32
      %38 = vector.broadcast %cst_28 : f32 to vector<8x128xf32>
      %39 = arith.mulf %37, %38 : vector<8x128xf32>
      %40 = arith.truncf %39 : vector<8x128xf32> to vector<8x128xbf16>
      %c0_29 = arith.constant 0 : index
      %c0_30 = arith.constant 0 : index
      %41 = vector.load %arg5[%c0_29, %c0_30] : memref<128x128xbf16, #tpu.memory_space<vmem>>, vector<128x128xbf16>
      %cst_31 = arith.constant dense<0.000000e+00> : vector<8x128xf32>
      %42 = tpu.matmul %40, %41, %cst_31 {dimension_numbers = #tpu.dot_dimension_numbers<[1], [0], [0], [1], [0, 0, 1, 1], [], []>} : vector<8x128xbf16>, vector<128x128xbf16>, vector<8x128xf32> -> vector<8x128xf32>
      %c0_32 = arith.constant 0 : index
      %c0_33 = arith.constant 0 : index
      %43 = vector.load %arg6[%c0_32, %c0_33] : memref<1x128xf32, #tpu.memory_space<vmem>>, vector<1x128xf32>
      %44 = vector.broadcast %43 : vector<1x128xf32> to vector<8x128xf32>
      %45 = arith.addf %42, %44 : vector<8x128xf32>
      %46 = tpu.iota {dimensions = array<i32: 0>} : vector<8x128xi32>
      %c2_i32 = arith.constant 2 : i32
      %47 = vector.broadcast %c2_i32 : i32 to vector<8x128xi32>
      %48 = arith.cmpi slt, %46, %47 : vector<8x128xi32>
      %49 = arith.extui %48 : vector<8x128xi1> to vector<8x128xi32>
      %50 = arith.sitofp %49 : vector<8x128xi32> to vector<8x128xf32>
      %51 = arith.mulf %45, %50 : vector<8x128xf32>
      %cst_34 = arith.constant dense<0.000000e+00> : vector<128xf32>
      %52 = vector.multi_reduction <add>, %51, %cst_34 [0] : vector<8x128xf32> to vector<128xf32>
      %53 = vector.shape_cast %52 : vector<128xf32> to vector<1x128xf32>
      %cst_35 = arith.constant 5.000000e-01 : f32
      %54 = vector.broadcast %cst_35 : f32 to vector<1x128xf32>
      %55 = arith.mulf %53, %54 : vector<1x128xf32>
      %56 = vector.broadcast %55 : vector<1x128xf32> to vector<8x128xf32>
      %57 = arith.subf %45, %56 : vector<8x128xf32>
      %58 = arith.mulf %57, %57 : vector<8x128xf32>
      %59 = arith.mulf %58, %50 : vector<8x128xf32>
      %cst_36 = arith.constant dense<0.000000e+00> : vector<128xf32>
      %60 = vector.multi_reduction <add>, %59, %cst_36 [0] : vector<8x128xf32> to vector<128xf32>
      %61 = vector.shape_cast %60 : vector<128xf32> to vector<1x128xf32>
      %cst_37 = arith.constant 5.000000e-01 : f32
      %62 = vector.broadcast %cst_37 : f32 to vector<1x128xf32>
      %63 = arith.mulf %61, %62 : vector<1x128xf32>
      %cst_38 = arith.constant 9.99999974E-6 : f32
      %64 = vector.broadcast %cst_38 : f32 to vector<1x128xf32>
      %65 = arith.addf %63, %64 : vector<1x128xf32>
      %66 = math.rsqrt %65 : vector<1x128xf32>
      %67 = vector.broadcast %66 : vector<1x128xf32> to vector<8x128xf32>
      %68 = arith.mulf %57, %67 : vector<8x128xf32>
      %c0_39 = arith.constant 0 : index
      %c0_40 = arith.constant 0 : index
      %69 = vector.load %arg7[%c0_39, %c0_40] : memref<1x128xf32, #tpu.memory_space<vmem>>, vector<1x128xf32>
      %70 = vector.broadcast %69 : vector<1x128xf32> to vector<8x128xf32>
      %71 = arith.mulf %68, %70 : vector<8x128xf32>
      %c0_41 = arith.constant 0 : index
      %c0_42 = arith.constant 0 : index
      %72 = vector.load %arg8[%c0_41, %c0_42] : memref<1x128xf32, #tpu.memory_space<vmem>>, vector<1x128xf32>
      %73 = vector.broadcast %72 : vector<1x128xf32> to vector<8x128xf32>
      %74 = arith.addf %71, %73 : vector<8x128xf32>
      %cst_43 = arith.constant 0.000000e+00 : f32
      %75 = vector.broadcast %cst_43 : f32 to vector<8x128xf32>
      %76 = arith.maximumf %74, %75 : vector<8x128xf32>
      %77 = arith.truncf %76 : vector<8x128xf32> to vector<8x128xbf16>
      %c0_44 = arith.constant 0 : index
      %c0_45 = arith.constant 0 : index
      %78 = vector.load %arg9[%c0_44, %c0_45] : memref<128x128xbf16, #tpu.memory_space<vmem>>, vector<128x128xbf16>
      %cst_46 = arith.constant dense<0.000000e+00> : vector<8x128xf32>
      %79 = tpu.matmul %77, %78, %cst_46 {dimension_numbers = #tpu.dot_dimension_numbers<[1], [0], [0], [1], [0, 0, 1, 1], [], []>} : vector<8x128xbf16>, vector<128x128xbf16>, vector<8x128xf32> -> vector<8x128xf32>
      %c0_47 = arith.constant 0 : index
      %c0_48 = arith.constant 0 : index
      %80 = vector.load %arg10[%c0_47, %c0_48] : memref<1x128xf32, #tpu.memory_space<vmem>>, vector<1x128xf32>
      %81 = vector.broadcast %80 : vector<1x128xf32> to vector<8x128xf32>
      %82 = arith.addf %79, %81 : vector<8x128xf32>
      %c0_49 = arith.constant 0 : index
      %c0_50 = arith.constant 0 : index
      %83 = vector.load %arg11[%c0_49, %c0_50] : memref<8x128xf32, #tpu.memory_space<vmem>>, vector<8x128xf32>
      tpu.vector_store %arg11[%c0_49, %c0_50], %82 {strides = array<i32>} : memref<8x128xf32, #tpu.memory_space<vmem>>, vector<8x128xf32>,
    } else {
    }
    return
  }
  func.func @transform_0(%arg0: i32) -> (i32, i32, i32, i32) {
    %c0_i32 = arith.constant 0 : i32
    %c0_i32_0 = arith.constant 0 : i32
    %c0_i32_1 = arith.constant 0 : i32
    %c0_i32_2 = arith.constant 0 : i32
    return %arg0, %c0_i32, %c0_i32_0, %c0_i32_1 : i32, i32, i32, i32
  }
  func.func @transform_1(%arg0: i32) -> (i32, i32, i32) {
    %c0_i32 = arith.constant 0 : i32
    %c0_i32_0 = arith.constant 0 : i32
    %c0_i32_1 = arith.constant 0 : i32
    %c0_i32_2 = arith.constant 0 : i32
    return %c0_i32, %c0_i32_0, %c0_i32_1 : i32, i32, i32
  }
  func.func @transform_2(%arg0: i32) -> (i32, i32) {
    %c0_i32 = arith.constant 0 : i32
    %c0_i32_0 = arith.constant 0 : i32
    %c0_i32_1 = arith.constant 0 : i32
    return %c0_i32, %c0_i32_0 : i32, i32
  }
  func.func @transform_3(%arg0: i32) -> (i32, i32) {
    %c0_i32 = arith.constant 0 : i32
    %c0_i32_0 = arith.constant 0 : i32
    %c0_i32_1 = arith.constant 0 : i32
    return %c0_i32, %c0_i32_0 : i32, i32
  }
  func.func @transform_4(%arg0: i32) -> (i32, i32) {
    %c0_i32 = arith.constant 0 : i32
    %c0_i32_0 = arith.constant 0 : i32
    %c0_i32_1 = arith.constant 0 : i32
    return %c0_i32, %c0_i32_0 : i32, i32
  }
  func.func @transform_5(%arg0: i32) -> (i32, i32) {
    %c0_i32 = arith.constant 0 : i32
    %c0_i32_0 = arith.constant 0 : i32
    %c0_i32_1 = arith.constant 0 : i32
    return %c0_i32, %c0_i32_0 : i32, i32
  }
  func.func @transform_6(%arg0: i32) -> (i32, i32) {
    %c0_i32 = arith.constant 0 : i32
    %c0_i32_0 = arith.constant 0 : i32
    %c0_i32_1 = arith.constant 0 : i32
    return %c0_i32, %c0_i32_0 : i32, i32
  }
  func.func @transform_7(%arg0: i32) -> (i32, i32) {
    %c0_i32 = arith.constant 0 : i32
    %c0_i32_0 = arith.constant 0 : i32
    %c0_i32_1 = arith.constant 0 : i32
    return %c0_i32, %c0_i32_0 : i32, i32
  }
  func.func @transform_8(%arg0: i32) -> (i32, i32) {
    %c0_i32 = arith.constant 0 : i32
    %c0_i32_0 = arith.constant 0 : i32
    %c0_i32_1 = arith.constant 0 : i32
    return %c0_i32, %c0_i32_0 : i32, i32
  }
  func.func @transform_9(%arg0: i32) -> (i32, i32) {
    %c0_i32 = arith.constant 0 : i32
    %c0_i32_0 = arith.constant 0 : i32
    %c0_i32_1 = arith.constant 0 : i32
    return %c0_i32, %c0_i32_0 : i32, i32
  }
  func.func @transform_10(%arg0: i32) -> (i32, i32) {
    %c0_i32 = arith.constant 0 : i32
    %c0_i32_0 = arith.constant 0 : i32
    %c0_i32_1 = arith.constant 0 : i32
    return %c0_i32, %c0_i32_0 : i32, i32
  }
}

</mosaic_0001>

<llo_original>
// kernel: tpu_custom_call.1
$region0: #{tpu_custom_call.1}
  #allocation0 [shape = 'u32[]', space=smem, size = 0x4, offset = 0x4, fixed_abs, tag = 'smem constant byte address 0x4 - core index']
  #allocation1 [shape = 'u32[72,128]{1,0:T(1,128)}', space=vmem, size = 0x9000, scoped, tag = 'internal scratch']
  #allocation2 [shape = 'f32[8,512]{1,0:T(8,128)}', space=vmem, size = 0x4000, scoped, tag = 'scratch operand']
  %s0 = inlined_call_operand.vmem [shape: bf16[1,8,18,72], index: 0, kind: input, shape index: {}]
  %s1 = inlined_call_operand.hbm [shape: bf16[3,72,512], index: 1, kind: input, shape index: {}]
  %s2 = inlined_call_operand.vmem [shape: f32[1,512], index: 2, kind: input, shape index: {}]
  %s3 = inlined_call_operand.hbm [shape: f32[512,128], index: 3, kind: input, shape index: {}]
  %s4 = inlined_call_operand.vmem [shape: bf16[128,128], index: 4, kind: input, shape index: {}]
  %s5 = inlined_call_operand.vmem [shape: f32[1,128], index: 5, kind: input, shape index: {}]
  %s6 = inlined_call_operand.vmem [shape: f32[1,128], index: 6, kind: input, shape index: {}]
  %s7 = inlined_call_operand.vmem [shape: f32[1,128], index: 7, kind: input, shape index: {}]
  %s8 = inlined_call_operand.vmem [shape: bf16[128,128], index: 8, kind: input, shape index: {}]
  %s9 = inlined_call_operand.vmem [shape: f32[1,128], index: 9, kind: input, shape index: {}]
  %s10 = inlined_call_operand.hbm [shape: f32[8,128], index: 10, kind: output, shape index: {}]
  %s11 = sld [smem:[#allocation0]]
  $region66: #{tpu_custom_call.1} parent=0
    _
  %s13 = ssub.s32 1, %s11
  %s14 = scalar_select 0, %s13, %s11
  $region1: #{tpu_custom_call.1} parent=0
    #allocation3 [shape = 'u8[221184]{0}', space=vmem, size = 0x36000, scoped, tag = 'input window, operand 1, single buffered']
    #allocation4 [shape = 's32[1]{0}', space=sflag, size = 0x4, scoped, tag = 'scoped memory for tpu_custom_call.1']
    #allocation5 [shape = 's32[1]{0}', space=sflag, size = 0x4, scoped, tag = 'scoped memory for tpu_custom_call.1']
    #allocation6 [shape = 'u8[262144]{0}', space=vmem, size = 0x40000, scoped, tag = 'input window, operand 3, single buffered']
    #allocation7 [shape = 's32[1]{0}', space=sflag, size = 0x4, scoped, tag = 'scoped memory for tpu_custom_call.1']
    #allocation8 [shape = 'u8[4096]{0}', space=vmem, size = 0x1000, scoped, tag = 'output window, operand 0, single buffered']
    %15 = vsyncpa [#allocation4], 0
    %16 = vsyncpa [#allocation7], 0
    %17 = vsyncpa [#allocation5], 0
    // Predicated region
    $region2: #{tpu_custom_call.1} parent=1 // pred_check
      _
    $region3: #{tpu_custom_call.1} parent=1 // pred_check_branch
      %19 = sbr.rel (0) target = $region5
    $region4: #{tpu_custom_call.1} parent=1 // pred_region
      _
    $region5: #{tpu_custom_call.1} parent=1 // pred_fallthru
      _
    // Predicated region
    $region6: #{tpu_custom_call.1} parent=1 // pred_check
      _
    $region7: #{tpu_custom_call.1} parent=1 // pred_check_branch
      %21 = sbr.rel (0) target = $region9
    $region8: #{tpu_custom_call.1} parent=1 // pred_region
      %23 = vsyncadd [#allocation4], 0
      %s24 = sshll.u32 %s1, 4
      %s25 = int_to_ptr.hbm [resolvable:$true] %s24
      %s26 = sshll.u32 [#allocation3], 4
      %s27 = int_to_ptr.vmem [resolvable:$true] %s26
      %32 = dma.hbm_to_vmem [thread:$0]  %s25, 6912, %s27, [#allocation4], 256, 256, 16
    $region9: #{tpu_custom_call.1} parent=1 // pred_fallthru
      _
    // Predicated region
    $region10: #{tpu_custom_call.1} parent=1 // pred_check
      _
    $region11: #{tpu_custom_call.1} parent=1 // pred_check_branch
      %34 = sbr.rel (0) target = $region13
    $region12: #{tpu_custom_call.1} parent=1 // pred_region
      _
    $region13: #{tpu_custom_call.1} parent=1 // pred_fallthru
      _
    // Predicated region
    $region14: #{tpu_custom_call.1} parent=1 // pred_check
      _
    $region15: #{tpu_custom_call.1} parent=1 // pred_check_branch
      %36 = sbr.rel (0) target = $region17
    $region16: #{tpu_custom_call.1} parent=1 // pred_region
      %38 = vsyncadd [#allocation7], 0
      %s39 = sshll.u32 %s3, 4
      %s40 = int_to_ptr.hbm [resolvable:$true] %s39
      %s41 = sshll.u32 [#allocation6], 4
      %s42 = int_to_ptr.vmem [resolvable:$true] %s41
      %47 = dma.hbm_to_vmem [thread:$0]  %s40, 8192, %s42, [#allocation7], 128, 128, 8
    $region17: #{tpu_custom_call.1} parent=1 // pred_fallthru
      _
    // Predicated region
    $region18: #{tpu_custom_call.1} parent=1 // pred_check
      _
    $region19: #{tpu_custom_call.1} parent=1 // pred_check_branch
      %49 = sbr.rel (0) target = $region21
    $region20: #{tpu_custom_call.1} parent=1 // pred_region
      _
    $region21: #{tpu_custom_call.1} parent=1 // pred_fallthru
      _
    // Predicated region
    $region22: #{tpu_custom_call.1} parent=1 // pred_check
      _
    $region23: #{tpu_custom_call.1} parent=1 // pred_check_branch
      %51 = sbr.rel (0) target = $region25
    $region24: #{tpu_custom_call.1} parent=1 // pred_region
      _
    $region25: #{tpu_custom_call.1} parent=1 // pred_fallthru
      _
    // Predicated region
    $region26: #{tpu_custom_call.1} parent=1 // pred_check
      _
    $region27: #{tpu_custom_call.1} parent=1 // pred_check_branch
      %53 = sbr.rel (0) target = $region29
    $region28: #{tpu_custom_call.1} parent=1 // pred_region
      _
    $region29: #{tpu_custom_call.1} parent=1 // pred_fallthru
      _
    // Predicated region
    $region30: #{tpu_custom_call.1} parent=1 // pred_check
      _
    $region31: #{tpu_custom_call.1} parent=1 // pred_check_branch
      %55 = sbr.rel (0) target = $region33
    $region32: #{tpu_custom_call.1} parent=1 // pred_region
      _
    $region33: #{tpu_custom_call.1} parent=1 // pred_fallthru
      _
    // Predicated region
    $region34: #{tpu_custom_call.1} parent=1 // pred_check
      _
    $region35: #{tpu_custom_call.1} parent=1 // pred_check_branch
      %57 = sbr.rel (0) target = $region37
    $region36: #{tpu_custom_call.1} parent=1 // pred_region
      _
    $region37: #{tpu_custom_call.1} parent=1 // pred_fallthru
      _
    // Predicated region
    $region38: #{tpu_custom_call.1} parent=1 // pred_check
      _
    $region39: #{tpu_custom_call.1} parent=1 // pred_check_branch
      %59 = sbr.rel (0) target = $region41
    $region40: #{tpu_custom_call.1} parent=1 // pred_region
      _
    $region41: #{tpu_custom_call.1} parent=1 // pred_fallthru
      _
    // Predicated region
    $region42: #{tpu_custom_call.1} parent=1 // pred_check
      _
    $region43: #{tpu_custom_call.1} parent=1 // pred_check_branch
      %61 = sbr.rel (0) target = $region45
    $region44: #{tpu_custom_call.1} parent=1 // pred_region
      %63 = dma.done [#allocation4], 6912
    $region45: #{tpu_custom_call.1} parent=1 // pred_fallthru
      _
    // Predicated region
    $region46: #{tpu_custom_call.1} parent=1 // pred_check
      _
    $region47: #{tpu_custom_call.1} parent=1 // pred_check_branch
      %65 = sbr.rel (0) target = $region49
    $region48: #{tpu_custom_call.1} parent=1 // pred_region
      %67 = dma.done [#allocation7], 8192
    $region49: #{tpu_custom_call.1} parent=1 // pred_fallthru
      _
    %p69 = scmp.eq.s32.totalorder 0, 0
    // Predicated region
    $region50: #{tpu_custom_call.1} parent=1 // pred_check
      %p70 = pneg %p69
    $region51: #{tpu_custom_call.1} parent=1 // pred_check_branch
      %72 = sbr.rel (%p70) target = $region53
    $region52: #{tpu_custom_call.1} parent=1 // pred_region
      %73 = vst [vmem:[#allocation2] sm:$0xff] 0.0
      %74 = vst [vmem:[#allocation2 + $0x8] sm:$0xff] 0.0
      %75 = vst [vmem:[#allocation2 + $0x10] sm:$0xff] 0.0
      %76 = vst [vmem:[#allocation2 + $0x18] sm:$0xff] 0.0
    $region53: #{tpu_custom_call.1} parent=1 // pred_fallthru
      _
    %v77 = vld [vmem:[%s0] sm:$0xf]
    %v78 = vld [vmem:[%s0 + $0x4] sm:$0xf]
    %v79 = vld [vmem:[%s0 + $0x8] sm:$0x1]
    %v80 = vld [vmem:[%s0 + $0xc] sm:$0xf]
    %v81 = vld [vmem:[%s0 + $0x10] sm:$0xf]
    %v82 = vld [vmem:[%s0 + $0x14] sm:$0x1]
    %v83 = vld [vmem:[%s0 + $0x18] sm:$0xf]
    %v84 = vld [vmem:[%s0 + $0x1c] sm:$0xf]
    %v85 = vld [vmem:[%s0 + $0x20] sm:$0x1]
    %v86 = vld [vmem:[%s0 + $0x24] sm:$0xf]
    %v87 = vld [vmem:[%s0 + $0x28] sm:$0xf]
    %v88 = vld [vmem:[%s0 + $0x2c] sm:$0x1]
    %v89 = vld [vmem:[%s0 + $0x30] sm:$0xf]
    %v90 = vld [vmem:[%s0 + $0x34] sm:$0xf]
    %v91 = vld [vmem:[%s0 + $0x38] sm:$0x1]
    %v92 = vld [vmem:[%s0 + $0x3c] sm:$0xf]
    %v93 = vld [vmem:[%s0 + $0x40] sm:$0xf]
    %v94 = vld [vmem:[%s0 + $0x44] sm:$0x1]
    %v95 = vld [vmem:[%s0 + $0x48] sm:$0xf]
    %v96 = vld [vmem:[%s0 + $0x4c] sm:$0xf]
    %v97 = vld [vmem:[%s0 + $0x50] sm:$0x1]
    %v98 = vld [vmem:[%s0 + $0x54] sm:$0xf]
    %v99 = vld [vmem:[%s0 + $0x58] sm:$0xf]
    %v100 = vld [vmem:[%s0 + $0x5c] sm:$0x1]
    %v101 = vld [vmem:[#allocation3] sm:$0xff]
    %v102 = vld [vmem:[#allocation3 + $0x8] sm:$0xff]
    %v103 = vld [vmem:[#allocation3 + $0x10] sm:$0xff]
    %v104 = vld [vmem:[#allocation3 + $0x18] sm:$0xff]
    %v105 = vld [vmem:[#allocation3 + $0x20] sm:$0xff]
    %v106 = vld [vmem:[#allocation3 + $0x28] sm:$0xff]
    %v107 = vld [vmem:[#allocation3 + $0x30] sm:$0xff]
    %v108 = vld [vmem:[#allocation3 + $0x38] sm:$0xff]
    %v109 = vld [vmem:[#allocation3 + $0x40] sm:$0xff]
    %v110 = vld [vmem:[#allocation3 + $0x48] sm:$0xff]
    %v111 = vld [vmem:[#allocation3 + $0x50] sm:$0xff]
    %v112 = vld [vmem:[#allocation3 + $0x58] sm:$0xff]
    %v113 = vld [vmem:[#allocation3 + $0x60] sm:$0xff]
    %v114 = vld [vmem:[#allocation3 + $0x68] sm:$0xff]
    %v115 = vld [vmem:[#allocation3 + $0x70] sm:$0xff]
    %v116 = vld [vmem:[#allocation3 + $0x78] sm:$0xff]
    %v117 = vld [vmem:[#allocation3 + $0x80] sm:$0xff]
    %v118 = vld [vmem:[#allocation3 + $0x88] sm:$0xff]
    %vm119 = vsmask.f32 3328
    %vm120 = vsmask.f32 7440
    %vm121 = vmor %vm119, %vm120
    %v123 = vshrl.u32 %v77, 16
    %v125 = vrot.slane %v123, 4
    %v126 = vshll.u32 %v77, 16
    %v128 = vrot.slane %v126, 5
    %v129 = vor.u32 %v125, %v128
    %v130 = vrot.slane %v129, 4
    %v132 = vshll.u32 %v78, 16
    %v134 = vrot.slane %v132, 5
    %v135 = vsel %vm121, %v130, %v134
    %v136 = vshrl.u32 %v78, 16
    %v138 = vrot.slane %v136, 4
    %v139 = vor.u32 %v138, %v134
    %v140 = vrot.slane %v139, 4
    %v142 = vshll.u32 %v79, 16
    %v144 = vrot.slane %v142, 5
    %v145 = vsel %vm121, %v140, %v144
    %v147 = vshrl.u32 %v80, 16
    %v149 = vrot.slane %v147, 4
    %v150 = vshll.u32 %v80, 16
    %v152 = vrot.slane %v150, 5
    %v153 = vor.u32 %v149, %v152
    %v154 = vrot.slane %v153, 4
    %v156 = vshll.u32 %v81, 16
    %v158 = vrot.slane %v156, 5
    %v159 = vsel %vm121, %v154, %v158
    %v160 = vshrl.u32 %v81, 16
    %v162 = vrot.slane %v160, 4
    %v163 = vor.u32 %v162, %v158
    %v164 = vrot.slane %v163, 4
    %v166 = vshll.u32 %v82, 16
    %v168 = vrot.slane %v166, 5
    %v169 = vsel %vm121, %v164, %v168
    %v171 = vshrl.u32 %v83, 16
    %v173 = vrot.slane %v171, 4
    %v174 = vshll.u32 %v83, 16
    %v176 = vrot.slane %v174, 5
    %v177 = vor.u32 %v173, %v176
    %v178 = vrot.slane %v177, 4
    %v180 = vshll.u32 %v84, 16
    %v182 = vrot.slane %v180, 5
    %v183 = vsel %vm121, %v178, %v182
    %v184 = vshrl.u32 %v84, 16
    %v186 = vrot.slane %v184, 4
    %v187 = vor.u32 %v186, %v182
    %v188 = vrot.slane %v187, 4
    %v190 = vshll.u32 %v85, 16
    %v192 = vrot.slane %v190, 5
    %v193 = vsel %vm121, %v188, %v192
    %v195 = vshrl.u32 %v86, 16
    %v197 = vrot.slane %v195, 4
    %v198 = vshll.u32 %v86, 16
    %v200 = vrot.slane %v198, 5
    %v201 = vor.u32 %v197, %v200
    %v202 = vrot.slane %v201, 4
    %v204 = vshll.u32 %v87, 16
    %v206 = vrot.slane %v204, 5
    %v207 = vsel %vm121, %v202, %v206
    %v208 = vshrl.u32 %v87, 16
    %v210 = vrot.slane %v208, 4
    %v211 = vor.u32 %v210, %v206
    %v212 = vrot.slane %v211, 4
    %v214 = vshll.u32 %v88, 16
    %v216 = vrot.slane %v214, 5
    %v217 = vsel %vm121, %v212, %v216
    %v219 = vshrl.u32 %v89, 16
    %v221 = vrot.slane %v219, 4
    %v222 = vshll.u32 %v89, 16
    %v224 = vrot.slane %v222, 5
    %v225 = vor.u32 %v221, %v224
    %v226 = vrot.slane %v225, 4
    %v228 = vshll.u32 %v90, 16
    %v230 = vrot.slane %v228, 5
    %v231 = vsel %vm121, %v226, %v230
    %v232 = vshrl.u32 %v90, 16
    %v234 = vrot.slane %v232, 4
    %v235 = vor.u32 %v234, %v230
    %v236 = vrot.slane %v235, 4
    %v238 = vshll.u32 %v91, 16
    %v240 = vrot.slane %v238, 5
    %v241 = vsel %vm121, %v236, %v240
    %v243 = vshrl.u32 %v92, 16
    %v245 = vrot.slane %v243, 4
    %v246 = vshll.u32 %v92, 16
    %v248 = vrot.slane %v246, 5
    %v249 = vor.u32 %v245, %v248
    %v250 = vrot.slane %v249, 4
    %v252 = vshll.u32 %v93, 16
    %v254 = vrot.slane %v252, 5
    %v255 = vsel %vm121, %v250, %v254
    %v256 = vshrl.u32 %v93, 16
    %v258 = vrot.slane %v256, 4
    %v259 = vor.u32 %v258, %v254
    %v260 = vrot.slane %v259, 4
    %v262 = vshll.u32 %v94, 16
    %v264 = vrot.slane %v262, 5
    %v265 = vsel %vm121, %v260, %v264
    %v267 = vshrl.u32 %v95, 16
    %v269 = vrot.slane %v267, 4
    %v270 = vshll.u32 %v95, 16
    %v272 = vrot.slane %v270, 5
    %v273 = vor.u32 %v269, %v272
    %v274 = vrot.slane %v273, 4
    %v276 = vshll.u32 %v96, 16
    %v278 = vrot.slane %v276, 5
    %v279 = vsel %vm121, %v274, %v278
    %v280 = vshrl.u32 %v96, 16
    %v282 = vrot.slane %v280, 4
    %v283 = vor.u32 %v282, %v278
    %v284 = vrot.slane %v283, 4
    %v286 = vshll.u32 %v97, 16
    %v288 = vrot.slane %v286, 5
    %v289 = vsel %vm121, %v284, %v288
    %v291 = vshrl.u32 %v98, 16
    %v293 = vrot.slane %v291, 4
    %v294 = vshll.u32 %v98, 16
    %v296 = vrot.slane %v294, 5
    %v297 = vor.u32 %v293, %v296
    %v298 = vrot.slane %v297, 4
    %v300 = vshll.u32 %v99, 16
    %v302 = vrot.slane %v300, 5
    %v303 = vsel %vm121, %v298, %v302
    %v304 = vshrl.u32 %v99, 16
    %v306 = vrot.slane %v304, 4
    %v307 = vor.u32 %v306, %v302
    %v308 = vrot.slane %v307, 4
    %v310 = vshll.u32 %v100, 16
    %v312 = vrot.slane %v310, 5
    %v313 = vsel %vm121, %v308, %v312
    %s314 = scalar_lea.vmem [#allocation3], 144
    %v315 = vld [vmem:[%s314] sm:$0xff]
    %v316 = vld [vmem:[%s314 + $0x8] sm:$0xff]
    %v317 = vld [vmem:[%s314 + $0x10] sm:$0xff]
    %v318 = vld [vmem:[%s314 + $0x18] sm:$0xff]
    %v319 = vld [vmem:[%s314 + $0x20] sm:$0xff]
    %v320 = vld [vmem:[%s314 + $0x28] sm:$0xff]
    %v321 = vld [vmem:[%s314 + $0x30] sm:$0xff]
    %v322 = vld [vmem:[%s314 + $0x38] sm:$0xff]
    %v323 = vld [vmem:[%s314 + $0x40] sm:$0xff]
    %v324 = vld [vmem:[%s314 + $0x48] sm:$0xff]
    %v325 = vld [vmem:[%s314 + $0x50] sm:$0xff]
    %v326 = vld [vmem:[%s314 + $0x58] sm:$0xff]
    %v327 = vld [vmem:[%s314 + $0x60] sm:$0xff]
    %v328 = vld [vmem:[%s314 + $0x68] sm:$0xff]
    %v329 = vld [vmem:[%s314 + $0x70] sm:$0xff]
    %v330 = vld [vmem:[%s314 + $0x78] sm:$0xff]
    %v331 = vld [vmem:[%s314 + $0x80] sm:$0xff]
    %v332 = vld [vmem:[%s314 + $0x88] sm:$0xff]
    %v333 = vunpack.c.l.b16 %v135
    %v334 = vunpack.c.l.b16 %v145
    %v335 = vunpack.c.l.b16 %v159
    %v336 = vunpack.c.l.b16 %v169
    %v337 = vunpack.c.l.b16 %v183
    %v338 = vunpack.c.l.b16 %v193
    %v339 = vunpack.c.l.b16 %v207
    %v340 = vunpack.c.l.b16 %v217
    %v341 = vunpack.c.l.b16 %v231
    %v342 = vunpack.c.l.b16 %v241
    %v343 = vunpack.c.l.b16 %v255
    %v344 = vunpack.c.l.b16 %v265
    %v345 = vunpack.c.l.b16 %v279
    %v346 = vunpack.c.l.b16 %v289
    %v347 = vunpack.c.l.b16 %v303
    %v348 = vunpack.c.l.b16 %v313
    %v349 = vpack.c.b16 %v334, %v333
    %v350 = vpack.c.b16 %v336, %v335
    %v351 = vpack.c.b16 %v338, %v337
    %v352 = vpack.c.b16 %v340, %v339
    %v353 = vpack.c.b16 %v342, %v341
    %v354 = vpack.c.b16 %v344, %v343
    %v355 = vpack.c.b16 %v346, %v345
    %v356 = vpack.c.b16 %v348, %v347
    %v375 = vunpack.c.l.b16 %v315
    %v376 = vunpack.c.h.b16 %v315
    %v377 = vunpack.c.l.b16 %v316
    %v378 = vunpack.c.h.b16 %v316
    %v379 = vunpack.c.l.b16 %v317
    %v380 = vunpack.c.h.b16 %v317
    %v381 = vunpack.c.l.b16 %v318
    %v382 = vunpack.c.h.b16 %v318
    %v383 = vunpack.c.l.b16 %v319
    %v384 = vunpack.c.h.b16 %v319
    %v385 = vunpack.c.l.b16 %v320
    %v386 = vunpack.c.h.b16 %v320
    %v387 = vunpack.c.l.b16 %v321
    %v388 = vunpack.c.h.b16 %v321
    %v389 = vunpack.c.l.b16 %v322
    %v390 = vunpack.c.h.b16 %v322
    %v391 = vunpack.c.l.b16 %v323
    %v392 = vunpack.c.h.b16 %v323
    %v393 = vunpack.c.l.b16 %v324
    %v394 = vunpack.c.h.b16 %v324
    %v395 = vunpack.c.l.b16 %v325
    %v396 = vunpack.c.h.b16 %v325
    %v397 = vunpack.c.l.b16 %v326
    %v398 = vunpack.c.h.b16 %v326
    %v399 = vunpack.c.l.b16 %v327
    %v400 = vunpack.c.h.b16 %v327
    %v401 = vunpack.c.l.b16 %v328
    %v402 = vunpack.c.h.b16 %v328
    %v403 = vunpack.c.l.b16 %v329
    %v404 = vunpack.c.h.b16 %v329
    %v405 = vunpack.c.l.b16 %v330
    %v406 = vunpack.c.h.b16 %v330
    %v407 = vunpack.c.l.b16 %v331
    %v408 = vunpack.c.h.b16 %v331
    %v409 = vunpack.c.l.b16 %v332
    %v410 = vunpack.c.h.b16 %v332
    %v411 = vpack.c.b16 %v379, %v375
    %v412 = vpack.c.b16 %v380, %v376
    %v413 = vpack.c.b16 %v381, %v377
    %v414 = vpack.c.b16 %v382, %v378
    %v415 = vpack.c.b16 %v387, %v383
    %v416 = vpack.c.b16 %v388, %v384
    %v417 = vpack.c.b16 %v389, %v385
    %v418 = vpack.c.b16 %v390, %v386
    %v419 = vpack.c.b16 %v395, %v391
    %v420 = vpack.c.b16 %v396, %v392
    %v421 = vpack.c.b16 %v397, %v393
    %v422 = vpack.c.b16 %v398, %v394
    %v423 = vpack.c.b16 %v403, %v399
    %v424 = vpack.c.b16 %v404, %v400
    %v425 = vpack.c.b16 %v405, %v401
    %v426 = vpack.c.b16 %v406, %v402
    %v427 = vpack.c.b16 %v407, %v407
    %v428 = vpack.c.b16 %v408, %v408
    %v429 = vpack.c.b16 %v409, %v409
    %v430 = vpack.c.b16 %v410, %v410
    %vm447 = vcmask 588800
    %v449 = vsel %vm447, %v349, 0
    %v452 = vsel %vm447, %v350, 0
    %v455 = vsel %vm447, %v351, 0
    %v458 = vsel %vm447, %v352, 0
    %v461 = vsel %vm447, %v353, 0
    %v464 = vsel %vm447, %v354, 0
    %v467 = vsel %vm447, %v355, 0
    %v470 = vsel %vm447, %v356, 0
    %vm472 = vcmask 1043456
    %v474 = vsel %vm472, %v427, 0
    %v477 = vsel %vm472, %v428, 0
    %v480 = vsel %vm472, %v429, 0
    %v483 = vsel %vm472, %v430, 0
    %485 = vmatpush.bf16.msra.mxu0 0
    %486 = vmatpush.bf16.msra.mxu0 0
    %487 = vmatpush.bf16.msra.mxu0 0
    %488 = vmatpush.bf16.msra.mxu0 %v474
    %489 = vmatpush.bf16.msra.mxu0 %v423
    %490 = vmatpush.bf16.msra.mxu0 %v419
    %491 = vmatpush.bf16.msra.mxu0 %v415
    %492 = vmatpush.bf16.msra.mxu0 %v411
    %493 = vmatmul.bf16.gmra.mxu0 %v449
    %v494 = vpop.f32.mrf.mxu0
    %v495 = vadd.f32 0.0, %v494
    %v496 = vpop.f32.mrf.mxu0
    %v497 = vadd.f32 0.0, %v496
    %498 = vmatmul.bf16.gmra.mxu0 %v452
    %v499 = vpop.f32.mrf.mxu0
    %v500 = vadd.f32 0.0, %v499
    %v501 = vpop.f32.mrf.mxu0
    %v502 = vadd.f32 0.0, %v501
    %503 = vmatmul.bf16.gmra.mxu0 %v455
    %v504 = vpop.f32.mrf.mxu0
    %v505 = vadd.f32 0.0, %v504
    %v506 = vpop.f32.mrf.mxu0
    %v507 = vadd.f32 0.0, %v506
    %508 = vmatmul.bf16.gmra.mxu0 %v458
    %v509 = vpop.f32.mrf.mxu0
    %v510 = vadd.f32 0.0, %v509
    %v511 = vpop.f32.mrf.mxu0
    %v512 = vadd.f32 0.0, %v511
    %513 = vmatmul.bf16.gmra.mxu0 %v461
    %v514 = vpop.f32.mrf.mxu0
    %v515 = vadd.f32 0.0, %v514
    %v516 = vpop.f32.mrf.mxu0
    %v517 = vadd.f32 0.0, %v516
    %518 = vmatmul.bf16.gmra.mxu0 %v464
    %v519 = vpop.f32.mrf.mxu0
    %v520 = vadd.f32 0.0, %v519
    %v521 = vpop.f32.mrf.mxu0
    %v522 = vadd.f32 0.0, %v521
    %523 = vmatmul.bf16.gmra.mxu0 %v467
    %v524 = vpop.f32.mrf.mxu0
    %v525 = vadd.f32 0.0, %v524
    %v526 = vpop.f32.mrf.mxu0
    %v527 = vadd.f32 0.0, %v526
    %528 = vmatmul.bf16.gmra.mxu0 %v470
    %v529 = vpop.f32.mrf.mxu0
    %v530 = vadd.f32 0.0, %v529
    %v531 = vpop.f32.mrf.mxu0
    %v532 = vadd.f32 0.0, %v531
    %533 = vdwg.mxu0
    %534 = vmatpush.bf16.msra.mxu0 0
    %535 = vmatpush.bf16.msra.mxu0 0
    %536 = vmatpush.bf16.msra.mxu0 0
    %537 = vmatpush.bf16.msra.mxu0 %v477
    %538 = vmatpush.bf16.msra.mxu0 %v424
    %539 = vmatpush.bf16.msra.mxu0 %v420
    %540 = vmatpush.bf16.msra.mxu0 %v416
    %541 = vmatpush.bf16.msra.mxu0 %v412
    %542 = vmatmul.bf16.gmra.mxu0 %v449
    %v543 = vpop.f32.mrf.mxu0
    %v544 = vadd.f32 0.0, %v543
    %v545 = vpop.f32.mrf.mxu0
    %v546 = vadd.f32 0.0, %v545
    %547 = vmatmul.bf16.gmra.mxu0 %v452
    %v548 = vpop.f32.mrf.mxu0
    %v549 = vadd.f32 0.0, %v548
    %v550 = vpop.f32.mrf.mxu0
    %v551 = vadd.f32 0.0, %v550
    %552 = vmatmul.bf16.gmra.mxu0 %v455
    %v553 = vpop.f32.mrf.mxu0
    %v554 = vadd.f32 0.0, %v553
    %v555 = vpop.f32.mrf.mxu0
    %v556 = vadd.f32 0.0, %v555
    %557 = vmatmul.bf16.gmra.mxu0 %v458
    %v558 = vpop.f32.mrf.mxu0
    %v559 = vadd.f32 0.0, %v558
    %v560 = vpop.f32.mrf.mxu0
    %v561 = vadd.f32 0.0, %v560
    %562 = vmatmul.bf16.gmra.mxu0 %v461
    %v563 = vpop.f32.mrf.mxu0
    %v564 = vadd.f32 0.0, %v563
    %v565 = vpop.f32.mrf.mxu0
    %v566 = vadd.f32 0.0, %v565
    %567 = vmatmul.bf16.gmra.mxu0 %v464
    %v568 = vpop.f32.mrf.mxu0
    %v569 = vadd.f32 0.0, %v568
    %v570 = vpop.f32.mrf.mxu0
    %v571 = vadd.f32 0.0, %v570
    %572 = vmatmul.bf16.gmra.mxu0 %v467
    %v573 = vpop.f32.mrf.mxu0
    %v574 = vadd.f32 0.0, %v573
    %v575 = vpop.f32.mrf.mxu0
    %v576 = vadd.f32 0.0, %v575
    %577 = vmatmul.bf16.gmra.mxu0 %v470
    %v578 = vpop.f32.mrf.mxu0
    %v579 = vadd.f32 0.0, %v578
    %v580 = vpop.f32.mrf.mxu0
    %v581 = vadd.f32 0.0, %v580
    %582 = vdwg.mxu0
    %583 = vmatpush.bf16.msra.mxu0 0
    %584 = vmatpush.bf16.msra.mxu0 0
    %585 = vmatpush.bf16.msra.mxu0 0
    %586 = vmatpush.bf16.msra.mxu0 %v480
    %587 = vmatpush.bf16.msra.mxu0 %v425
    %588 = vmatpush.bf16.msra.mxu0 %v421
    %589 = vmatpush.bf16.msra.mxu0 %v417
    %590 = vmatpush.bf16.msra.mxu0 %v413
    %591 = vmatmul.bf16.gmra.mxu0 %v449
    %v592 = vpop.f32.mrf.mxu0
    %v593 = vadd.f32 0.0, %v592
    %v594 = vpop.f32.mrf.mxu0
    %v595 = vadd.f32 0.0, %v594
    %596 = vmatmul.bf16.gmra.mxu0 %v452
    %v597 = vpop.f32.mrf.mxu0
    %v598 = vadd.f32 0.0, %v597
    %v599 = vpop.f32.mrf.mxu0
    %v600 = vadd.f32 0.0, %v599
    %601 = vmatmul.bf16.gmra.mxu0 %v455
    %v602 = vpop.f32.mrf.mxu0
    %v603 = vadd.f32 0.0, %v602
    %v604 = vpop.f32.mrf.mxu0
    %v605 = vadd.f32 0.0, %v604
    %606 = vmatmul.bf16.gmra.mxu0 %v458
    %v607 = vpop.f32.mrf.mxu0
    %v608 = vadd.f32 0.0, %v607
    %v609 = vpop.f32.mrf.mxu0
    %v610 = vadd.f32 0.0, %v609
    %611 = vmatmul.bf16.gmra.mxu0 %v461
    %v612 = vpop.f32.mrf.mxu0
    %v613 = vadd.f32 0.0, %v612
    %v614 = vpop.f32.mrf.mxu0
    %v615 = vadd.f32 0.0, %v614
    %616 = vmatmul.bf16.gmra.mxu0 %v464
    %v617 = vpop.f32.mrf.mxu0
    %v618 = vadd.f32 0.0, %v617
    %v619 = vpop.f32.mrf.mxu0
    %v620 = vadd.f32 0.0, %v619
    %621 = vmatmul.bf16.gmra.mxu0 %v467
    %v622 = vpop.f32.mrf.mxu0
    %v623 = vadd.f32 0.0, %v622
    %v624 = vpop.f32.mrf.mxu0
    %v625 = vadd.f32 0.0, %v624
    %626 = vmatmul.bf16.gmra.mxu0 %v470
    %v627 = vpop.f32.mrf.mxu0
    %v628 = vadd.f32 0.0, %v627
    %v629 = vpop.f32.mrf.mxu0
    %v630 = vadd.f32 0.0, %v629
    %631 = vdwg.mxu0
    %632 = vmatpush.bf16.msra.mxu0 0
    %633 = vmatpush.bf16.msra.mxu0 0
    %634 = vmatpush.bf16.msra.mxu0 0
    %635 = vmatpush.bf16.msra.mxu0 %v483
    %636 = vmatpush.bf16.msra.mxu0 %v426
    %637 = vmatpush.bf16.msra.mxu0 %v422
    %638 = vmatpush.bf16.msra.mxu0 %v418
    %639 = vmatpush.bf16.msra.mxu0 %v414
    %640 = vmatmul.bf16.gmra.mxu0 %v449
    %v641 = vpop.f32.mrf.mxu0
    %v642 = vadd.f32 0.0, %v641
    %v643 = vpop.f32.mrf.mxu0
    %v644 = vadd.f32 0.0, %v643
    %645 = vmatmul.bf16.gmra.mxu0 %v452
    %v646 = vpop.f32.mrf.mxu0
    %v647 = vadd.f32 0.0, %v646
    %v648 = vpop.f32.mrf.mxu0
    %v649 = vadd.f32 0.0, %v648
    %650 = vmatmul.bf16.gmra.mxu0 %v455
    %v651 = vpop.f32.mrf.mxu0
    %v652 = vadd.f32 0.0, %v651
    %v653 = vpop.f32.mrf.mxu0
    %v654 = vadd.f32 0.0, %v653
    %655 = vmatmul.bf16.gmra.mxu0 %v458
    %v656 = vpop.f32.mrf.mxu0
    %v657 = vadd.f32 0.0, %v656
    %v658 = vpop.f32.mrf.mxu0
    %v659 = vadd.f32 0.0, %v658
    %660 = vmatmul.bf16.gmra.mxu0 %v461
    %v661 = vpop.f32.mrf.mxu0
    %v662 = vadd.f32 0.0, %v661
    %v663 = vpop.f32.mrf.mxu0
    %v664 = vadd.f32 0.0, %v663
    %665 = vmatmul.bf16.gmra.mxu0 %v464
    %v666 = vpop.f32.mrf.mxu0
    %v667 = vadd.f32 0.0, %v666
    %v668 = vpop.f32.mrf.mxu0
    %v669 = vadd.f32 0.0, %v668
    %670 = vmatmul.bf16.gmra.mxu0 %v467
    %v671 = vpop.f32.mrf.mxu0
    %v672 = vadd.f32 0.0, %v671
    %v673 = vpop.f32.mrf.mxu0
    %v674 = vadd.f32 0.0, %v673
    %675 = vmatmul.bf16.gmra.mxu0 %v470
    %v676 = vpop.f32.mrf.mxu0
    %v677 = vadd.f32 0.0, %v676
    %v678 = vpop.f32.mrf.mxu0
    %v679 = vadd.f32 0.0, %v678
    %680 = vdwg.mxu0
    %v697 = vunpack.c.l.b16 %v77
    %v698 = vunpack.c.l.b16 %v78
    %v699 = vunpack.c.l.b16 %v80
    %v700 = vunpack.c.l.b16 %v81
    %v701 = vunpack.c.l.b16 %v83
    %v702 = vunpack.c.l.b16 %v84
    %v703 = vunpack.c.l.b16 %v86
    %v704 = vunpack.c.l.b16 %v87
    %v705 = vunpack.c.l.b16 %v89
    %v706 = vunpack.c.l.b16 %v90
    %v707 = vunpack.c.l.b16 %v92
    %v708 = vunpack.c.l.b16 %v93
    %v709 = vunpack.c.l.b16 %v95
    %v710 = vunpack.c.l.b16 %v96
    %v711 = vunpack.c.l.b16 %v98
    %v712 = vunpack.c.l.b16 %v99
    %v713 = vpack.c.b16 %v698, %v697
    %v714 = vpack.c.b16 %v700, %v699
    %v715 = vpack.c.b16 %v702, %v701
    %v716 = vpack.c.b16 %v704, %v703
    %v717 = vpack.c.b16 %v706, %v705
    %v718 = vpack.c.b16 %v708, %v707
    %v719 = vpack.c.b16 %v710, %v709
    %v720 = vpack.c.b16 %v712, %v711
    %v739 = vunpack.c.l.b16 %v101
    %v740 = vunpack.c.h.b16 %v101
    %v741 = vunpack.c.l.b16 %v102
    %v742 = vunpack.c.h.b16 %v102
    %v743 = vunpack.c.l.b16 %v103
    %v744 = vunpack.c.h.b16 %v103
    %v745 = vunpack.c.l.b16 %v104
    %v746 = vunpack.c.h.b16 %v104
    %v747 = vunpack.c.l.b16 %v105
    %v748 = vunpack.c.h.b16 %v105
    %v749 = vunpack.c.l.b16 %v106
    %v750 = vunpack.c.h.b16 %v106
    %v751 = vunpack.c.l.b16 %v107
    %v752 = vunpack.c.h.b16 %v107
    %v753 = vunpack.c.l.b16 %v108
    %v754 = vunpack.c.h.b16 %v108
    %v755 = vunpack.c.l.b16 %v109
    %v756 = vunpack.c.h.b16 %v109
    %v757 = vunpack.c.l.b16 %v110
    %v758 = vunpack.c.h.b16 %v110
    %v759 = vunpack.c.l.b16 %v111
    %v760 = vunpack.c.h.b16 %v111
    %v761 = vunpack.c.l.b16 %v112
    %v762 = vunpack.c.h.b16 %v112
    %v763 = vunpack.c.l.b16 %v113
    %v764 = vunpack.c.h.b16 %v113
    %v765 = vunpack.c.l.b16 %v114
    %v766 = vunpack.c.h.b16 %v114
    %v767 = vunpack.c.l.b16 %v115
    %v768 = vunpack.c.h.b16 %v115
    %v769 = vunpack.c.l.b16 %v116
    %v770 = vunpack.c.h.b16 %v116
    %v771 = vunpack.c.l.b16 %v117
    %v772 = vunpack.c.h.b16 %v117
    %v773 = vunpack.c.l.b16 %v118
    %v774 = vunpack.c.h.b16 %v118
    %v775 = vpack.c.b16 %v743, %v739
    %v776 = vpack.c.b16 %v744, %v740
    %v777 = vpack.c.b16 %v745, %v741
    %v778 = vpack.c.b16 %v746, %v742
    %v779 = vpack.c.b16 %v751, %v747
    %v780 = vpack.c.b16 %v752, %v748
    %v781 = vpack.c.b16 %v753, %v749
    %v782 = vpack.c.b16 %v754, %v750
    %v783 = vpack.c.b16 %v759, %v755
    %v784 = vpack.c.b16 %v760, %v756
    %v785 = vpack.c.b16 %v761, %v757
    %v786 = vpack.c.b16 %v762, %v758
    %v787 = vpack.c.b16 %v767, %v763
    %v788 = vpack.c.b16 %v768, %v764
    %v789 = vpack.c.b16 %v769, %v765
    %v790 = vpack.c.b16 %v770, %v766
    %v791 = vpack.c.b16 %v771, %v771
    %v792 = vpack.c.b16 %v772, %v772
    %v793 = vpack.c.b16 %v773, %v773
    %v794 = vpack.c.b16 %v774, %v774
    %v812 = vsel %vm447, %v713, 0
    %v815 = vsel %vm447, %v714, 0
    %v818 = vsel %vm447, %v715, 0
    %v821 = vsel %vm447, %v716, 0
    %v824 = vsel %vm447, %v717, 0
    %v827 = vsel %vm447, %v718, 0
    %v830 = vsel %vm447, %v719, 0
    %v833 = vsel %vm447, %v720, 0
    %v836 = vsel %vm472, %v791, 0
    %v839 = vsel %vm472, %v792, 0
    %v842 = vsel %vm472, %v793, 0
    %v845 = vsel %vm472, %v794, 0
    %847 = vmatpush.bf16.msra.mxu0 0
    %848 = vmatpush.bf16.msra.mxu0 0
    %849 = vmatpush.bf16.msra.mxu0 0
    %850 = vmatpush.bf16.msra.mxu0 %v836
    %851 = vmatpush.bf16.msra.mxu0 %v787
    %852 = vmatpush.bf16.msra.mxu0 %v783
    %853 = vmatpush.bf16.msra.mxu0 %v779
    %854 = vmatpush.bf16.msra.mxu0 %v775
    %855 = vmatmul.bf16.gmra.mxu0 %v812
    %v856 = vpop.f32.mrf.mxu0
    %v857 = vadd.f32 %v495, %v856
    %v858 = vpop.f32.mrf.mxu0
    %v859 = vadd.f32 %v497, %v858
    %860 = vmatmul.bf16.gmra.mxu0 %v815
    %v861 = vpop.f32.mrf.mxu0
    %v862 = vadd.f32 %v500, %v861
    %v863 = vpop.f32.mrf.mxu0
    %v864 = vadd.f32 %v502, %v863
    %865 = vmatmul.bf16.gmra.mxu0 %v818
    %v866 = vpop.f32.mrf.mxu0
    %v867 = vadd.f32 %v505, %v866
    %v868 = vpop.f32.mrf.mxu0
    %v869 = vadd.f32 %v507, %v868
    %870 = vmatmul.bf16.gmra.mxu0 %v821
    %v871 = vpop.f32.mrf.mxu0
    %v872 = vadd.f32 %v510, %v871
    %v873 = vpop.f32.mrf.mxu0
    %v874 = vadd.f32 %v512, %v873
    %875 = vmatmul.bf16.gmra.mxu0 %v824
    %v876 = vpop.f32.mrf.mxu0
    %v877 = vadd.f32 %v515, %v876
    %v878 = vpop.f32.mrf.mxu0
    %v879 = vadd.f32 %v517, %v878
    %880 = vmatmul.bf16.gmra.mxu0 %v827
    %v881 = vpop.f32.mrf.mxu0
    %v882 = vadd.f32 %v520, %v881
    %v883 = vpop.f32.mrf.mxu0
    %v884 = vadd.f32 %v522, %v883
    %885 = vmatmul.bf16.gmra.mxu0 %v830
    %v886 = vpop.f32.mrf.mxu0
    %v887 = vadd.f32 %v525, %v886
    %v888 = vpop.f32.mrf.mxu0
    %v889 = vadd.f32 %v527, %v888
    %890 = vmatmul.bf16.gmra.mxu0 %v833
    %v891 = vpop.f32.mrf.mxu0
    %v892 = vadd.f32 %v530, %v891
    %v893 = vpop.f32.mrf.mxu0
    %v894 = vadd.f32 %v532, %v893
    %895 = vdwg.mxu0
    %896 = vmatpush.bf16.msra.mxu0 0
    %897 = vmatpush.bf16.msra.mxu0 0
    %898 = vmatpush.bf16.msra.mxu0 0
    %899 = vmatpush.bf16.msra.mxu0 %v839
    %900 = vmatpush.bf16.msra.mxu0 %v788
    %901 = vmatpush.bf16.msra.mxu0 %v784
    %902 = vmatpush.bf16.msra.mxu0 %v780
    %903 = vmatpush.bf16.msra.mxu0 %v776
    %904 = vmatmul.bf16.gmra.mxu0 %v812
    %v905 = vpop.f32.mrf.mxu0
    %v906 = vadd.f32 %v544, %v905
    %v907 = vpop.f32.mrf.mxu0
    %v908 = vadd.f32 %v546, %v907
    %909 = vmatmul.bf16.gmra.mxu0 %v815
    %v910 = vpop.f32.mrf.mxu0
    %v911 = vadd.f32 %v549, %v910
    %v912 = vpop.f32.mrf.mxu0
    %v913 = vadd.f32 %v551, %v912
    %914 = vmatmul.bf16.gmra.mxu0 %v818
    %v915 = vpop.f32.mrf.mxu0
    %v916 = vadd.f32 %v554, %v915
    %v917 = vpop.f32.mrf.mxu0
    %v918 = vadd.f32 %v556, %v917
    %919 = vmatmul.bf16.gmra.mxu0 %v821
    %v920 = vpop.f32.mrf.mxu0
    %v921 = vadd.f32 %v559, %v920
    %v922 = vpop.f32.mrf.mxu0
    %v923 = vadd.f32 %v561, %v922
    %924 = vmatmul.bf16.gmra.mxu0 %v824
    %v925 = vpop.f32.mrf.mxu0
    %v926 = vadd.f32 %v564, %v925
    %v927 = vpop.f32.mrf.mxu0
    %v928 = vadd.f32 %v566, %v927
    %929 = vmatmul.bf16.gmra.mxu0 %v827
    %v930 = vpop.f32.mrf.mxu0
    %v931 = vadd.f32 %v569, %v930
    %v932 = vpop.f32.mrf.mxu0
    %v933 = vadd.f32 %v571, %v932
    %934 = vmatmul.bf16.gmra.mxu0 %v830
    %v935 = vpop.f32.mrf.mxu0
    %v936 = vadd.f32 %v574, %v935
    %v937 = vpop.f32.mrf.mxu0
    %v938 = vadd.f32 %v576, %v937
    %939 = vmatmul.bf16.gmra.mxu0 %v833
    %v940 = vpop.f32.mrf.mxu0
    %v941 = vadd.f32 %v579, %v940
    %v942 = vpop.f32.mrf.mxu0
    %v943 = vadd.f32 %v581, %v942
    %944 = vdwg.mxu0
    %945 = vmatpush.bf16.msra.mxu0 0
    %946 = vmatpush.bf16.msra.mxu0 0
    %947 = vmatpush.bf16.msra.mxu0 0
    %948 = vmatpush.bf16.msra.mxu0 %v842
    %949 = vmatpush.bf16.msra.mxu0 %v789
    %950 = vmatpush.bf16.msra.mxu0 %v785
    %951 = vmatpush.bf16.msra.mxu0 %v781
    %952 = vmatpush.bf16.msra.mxu0 %v777
    %953 = vmatmul.bf16.gmra.mxu0 %v812
    %v954 = vpop.f32.mrf.mxu0
    %v955 = vadd.f32 %v593, %v954
    %v956 = vpop.f32.mrf.mxu0
    %v957 = vadd.f32 %v595, %v956
    %958 = vmatmul.bf16.gmra.mxu0 %v815
    %v959 = vpop.f32.mrf.mxu0
    %v960 = vadd.f32 %v598, %v959
    %v961 = vpop.f32.mrf.mxu0
    %v962 = vadd.f32 %v600, %v961
    %963 = vmatmul.bf16.gmra.mxu0 %v818
    %v964 = vpop.f32.mrf.mxu0
    %v965 = vadd.f32 %v603, %v964
    %v966 = vpop.f32.mrf.mxu0
    %v967 = vadd.f32 %v605, %v966
    %968 = vmatmul.bf16.gmra.mxu0 %v821
    %v969 = vpop.f32.mrf.mxu0
    %v970 = vadd.f32 %v608, %v969
    %v971 = vpop.f32.mrf.mxu0
    %v972 = vadd.f32 %v610, %v971
    %973 = vmatmul.bf16.gmra.mxu0 %v824
    %v974 = vpop.f32.mrf.mxu0
    %v975 = vadd.f32 %v613, %v974
    %v976 = vpop.f32.mrf.mxu0
    %v977 = vadd.f32 %v615, %v976
    %978 = vmatmul.bf16.gmra.mxu0 %v827
    %v979 = vpop.f32.mrf.mxu0
    %v980 = vadd.f32 %v618, %v979
    %v981 = vpop.f32.mrf.mxu0
    %v982 = vadd.f32 %v620, %v981
    %983 = vmatmul.bf16.gmra.mxu0 %v830
    %v984 = vpop.f32.mrf.mxu0
    %v985 = vadd.f32 %v623, %v984
    %v986 = vpop.f32.mrf.mxu0
    %v987 = vadd.f32 %v625, %v986
    %988 = vmatmul.bf16.gmra.mxu0 %v833
    %v989 = vpop.f32.mrf.mxu0
    %v990 = vadd.f32 %v628, %v989
    %v991 = vpop.f32.mrf.mxu0
    %v992 = vadd.f32 %v630, %v991
    %993 = vdwg.mxu0
    %994 = vmatpush.bf16.msra.mxu0 0
    %995 = vmatpush.bf16.msra.mxu0 0
    %996 = vmatpush.bf16.msra.mxu0 0
    %997 = vmatpush.bf16.msra.mxu0 %v845
    %998 = vmatpush.bf16.msra.mxu0 %v790
    %999 = vmatpush.bf16.msra.mxu0 %v786
    %1000 = vmatpush.bf16.msra.mxu0 %v782
    %1001 = vmatpush.bf16.msra.mxu0 %v778
    %1002 = vmatmul.bf16.gmra.mxu0 %v812
    %v1003 = vpop.f32.mrf.mxu0
    %v1004 = vadd.f32 %v642, %v1003
    %v1005 = vpop.f32.mrf.mxu0
    %v1006 = vadd.f32 %v644, %v1005
    %1007 = vmatmul.bf16.gmra.mxu0 %v815
    %v1008 = vpop.f32.mrf.mxu0
    %v1009 = vadd.f32 %v647, %v1008
    %v1010 = vpop.f32.mrf.mxu0
    %v1011 = vadd.f32 %v649, %v1010
    %1012 = vmatmul.bf16.gmra.mxu0 %v818
    %v1013 = vpop.f32.mrf.mxu0
    %v1014 = vadd.f32 %v652, %v1013
    %v1015 = vpop.f32.mrf.mxu0
    %v1016 = vadd.f32 %v654, %v1015
    %1017 = vmatmul.bf16.gmra.mxu0 %v821
    %v1018 = vpop.f32.mrf.mxu0
    %v1019 = vadd.f32 %v657, %v1018
    %v1020 = vpop.f32.mrf.mxu0
    %v1021 = vadd.f32 %v659, %v1020
    %1022 = vmatmul.bf16.gmra.mxu0 %v824
    %v1023 = vpop.f32.mrf.mxu0
    %v1024 = vadd.f32 %v662, %v1023
    %v1025 = vpop.f32.mrf.mxu0
    %v1026 = vadd.f32 %v664, %v1025
    %1027 = vmatmul.bf16.gmra.mxu0 %v827
    %v1028 = vpop.f32.mrf.mxu0
    %v1029 = vadd.f32 %v667, %v1028
    %v1030 = vpop.f32.mrf.mxu0
    %v1031 = vadd.f32 %v669, %v1030
    %1032 = vmatmul.bf16.gmra.mxu0 %v830
    %v1033 = vpop.f32.mrf.mxu0
    %v1034 = vadd.f32 %v672, %v1033
    %v1035 = vpop.f32.mrf.mxu0
    %v1036 = vadd.f32 %v674, %v1035
    %1037 = vmatmul.bf16.gmra.mxu0 %v833
    %v1038 = vpop.f32.mrf.mxu0
    %v1039 = vadd.f32 %v677, %v1038
    %v1040 = vpop.f32.mrf.mxu0
    %v1041 = vadd.f32 %v679, %v1040
    %1042 = vdwg.mxu0
    %vm1051 = vcmask 1042432
    %vm1052 = vcmask 1046532
    %vm1053 = vmor %vm1051, %vm1052
    %v1054 = vrot.slane %v77, 5
    %v1055 = vrot.slane %v1054, 4
    %v1056 = vrot.slane %v78, 5
    %v1057 = vsel %vm1053, %v1055, %v1056
    %v1058 = vrot.slane %v1056, 4
    %v1059 = vrot.slane %v79, 5
    %v1060 = vsel %vm1053, %v1058, %v1059
    %v1061 = vrot.slane %v80, 5
    %v1062 = vrot.slane %v1061, 4
    %v1063 = vrot.slane %v81, 5
    %v1064 = vsel %vm1053, %v1062, %v1063
    %v1065 = vrot.slane %v1063, 4
    %v1066 = vrot.slane %v82, 5
    %v1067 = vsel %vm1053, %v1065, %v1066
    %v1068 = vrot.slane %v83, 5
    %v1069 = vrot.slane %v1068, 4
    %v1070 = vrot.slane %v84, 5
    %v1071 = vsel %vm1053, %v1069, %v1070
    %v1072 = vrot.slane %v1070, 4
    %v1073 = vrot.slane %v85, 5
    %v1074 = vsel %vm1053, %v1072, %v1073
    %v1075 = vrot.slane %v86, 5
    %v1076 = vrot.slane %v1075, 4
    %v1077 = vrot.slane %v87, 5
    %v1078 = vsel %vm1053, %v1076, %v1077
    %v1079 = vrot.slane %v1077, 4
    %v1080 = vrot.slane %v88, 5
    %v1081 = vsel %vm1053, %v1079, %v1080
    %v1082 = vrot.slane %v89, 5
    %v1083 = vrot.slane %v1082, 4
    %v1084 = vrot.slane %v90, 5
    %v1085 = vsel %vm1053, %v1083, %v1084
    %v1086 = vrot.slane %v1084, 4
    %v1087 = vrot.slane %v91, 5
    %v1088 = vsel %vm1053, %v1086, %v1087
    %v1089 = vrot.slane %v92, 5
    %v1090 = vrot.slane %v1089, 4
    %v1091 = vrot.slane %v93, 5
    %v1092 = vsel %vm1053, %v1090, %v1091
    %v1093 = vrot.slane %v1091, 4
    %v1094 = vrot.slane %v94, 5
    %v1095 = vsel %vm1053, %v1093, %v1094
    %v1096 = vrot.slane %v95, 5
    %v1097 = vrot.slane %v1096, 4
    %v1098 = vrot.slane %v96, 5
    %v1099 = vsel %vm1053, %v1097, %v1098
    %v1100 = vrot.slane %v1098, 4
    %v1101 = vrot.slane %v97, 5
    %v1102 = vsel %vm1053, %v1100, %v1101
    %v1103 = vrot.slane %v98, 5
    %v1104 = vrot.slane %v1103, 4
    %v1105 = vrot.slane %v99, 5
    %v1106 = vsel %vm1053, %v1104, %v1105
    %v1107 = vrot.slane %v1105, 4
    %v1108 = vrot.slane %v100, 5
    %v1109 = vsel %vm1053, %v1107, %v1108
    %s1110 = scalar_lea.vmem [#allocation3], 288
    %v1111 = vld [vmem:[%s1110] sm:$0xff]
    %v1112 = vld [vmem:[%s1110 + $0x8] sm:$0xff]
    %v1113 = vld [vmem:[%s1110 + $0x10] sm:$0xff]
    %v1114 = vld [vmem:[%s1110 + $0x18] sm:$0xff]
    %v1115 = vld [vmem:[%s1110 + $0x20] sm:$0xff]
    %v1116 = vld [vmem:[%s1110 + $0x28] sm:$0xff]
    %v1117 = vld [vmem:[%s1110 + $0x30] sm:$0xff]
    %v1118 = vld [vmem:[%s1110 + $0x38] sm:$0xff]
    %v1119 = vld [vmem:[%s1110 + $0x40] sm:$0xff]
    %v1120 = vld [vmem:[%s1110 + $0x48] sm:$0xff]
    %v1121 = vld [vmem:[%s1110 + $0x50] sm:$0xff]
    %v1122 = vld [vmem:[%s1110 + $0x58] sm:$0xff]
    %v1123 = vld [vmem:[%s1110 + $0x60] sm:$0xff]
    %v1124 = vld [vmem:[%s1110 + $0x68] sm:$0xff]
    %v1125 = vld [vmem:[%s1110 + $0x70] sm:$0xff]
    %v1126 = vld [vmem:[%s1110 + $0x78] sm:$0xff]
    %v1127 = vld [vmem:[%s1110 + $0x80] sm:$0xff]
    %v1128 = vld [vmem:[%s1110 + $0x88] sm:$0xff]
    %v1129 = vunpack.c.l.b16 %v1057
    %v1130 = vunpack.c.l.b16 %v1060
    %v1131 = vunpack.c.l.b16 %v1064
    %v1132 = vunpack.c.l.b16 %v1067
    %v1133 = vunpack.c.l.b16 %v1071
    %v1134 = vunpack.c.l.b16 %v1074
    %v1135 = vunpack.c.l.b16 %v1078
    %v1136 = vunpack.c.l.b16 %v1081
    %v1137 = vunpack.c.l.b16 %v1085
    %v1138 = vunpack.c.l.b16 %v1088
    %v1139 = vunpack.c.l.b16 %v1092
    %v1140 = vunpack.c.l.b16 %v1095
    %v1141 = vunpack.c.l.b16 %v1099
    %v1142 = vunpack.c.l.b16 %v1102
    %v1143 = vunpack.c.l.b16 %v1106
    %v1144 = vunpack.c.l.b16 %v1109
    %v1145 = vpack.c.b16 %v1130, %v1129
    %v1146 = vpack.c.b16 %v1132, %v1131
    %v1147 = vpack.c.b16 %v1134, %v1133
    %v1148 = vpack.c.b16 %v1136, %v1135
    %v1149 = vpack.c.b16 %v1138, %v1137
    %v1150 = vpack.c.b16 %v1140, %v1139
    %v1151 = vpack.c.b16 %v1142, %v1141
    %v1152 = vpack.c.b16 %v1144, %v1143
    %v1171 = vunpack.c.l.b16 %v1111
    %v1172 = vunpack.c.h.b16 %v1111
    %v1173 = vunpack.c.l.b16 %v1112
    %v1174 = vunpack.c.h.b16 %v1112
    %v1175 = vunpack.c.l.b16 %v1113
    %v1176 = vunpack.c.h.b16 %v1113
    %v1177 = vunpack.c.l.b16 %v1114
    %v1178 = vunpack.c.h.b16 %v1114
    %v1179 = vunpack.c.l.b16 %v1115
    %v1180 = vunpack.c.h.b16 %v1115
    %v1181 = vunpack.c.l.b16 %v1116
    %v1182 = vunpack.c.h.b16 %v1116
    %v1183 = vunpack.c.l.b16 %v1117
    %v1184 = vunpack.c.h.b16 %v1117
    %v1185 = vunpack.c.l.b16 %v1118
    %v1186 = vunpack.c.h.b16 %v1118
    %v1187 = vunpack.c.l.b16 %v1119
    %v1188 = vunpack.c.h.b16 %v1119
    %v1189 = vunpack.c.l.b16 %v1120
    %v1190 = vunpack.c.h.b16 %v1120
    %v1191 = vunpack.c.l.b16 %v1121
    %v1192 = vunpack.c.h.b16 %v1121
    %v1193 = vunpack.c.l.b16 %v1122
    %v1194 = vunpack.c.h.b16 %v1122
    %v1195 = vunpack.c.l.b16 %v1123
    %v1196 = vunpack.c.h.b16 %v1123
    %v1197 = vunpack.c.l.b16 %v1124
    %v1198 = vunpack.c.h.b16 %v1124
    %v1199 = vunpack.c.l.b16 %v1125
    %v1200 = vunpack.c.h.b16 %v1125
    %v1201 = vunpack.c.l.b16 %v1126
    %v1202 = vunpack.c.h.b16 %v1126
    %v1203 = vunpack.c.l.b16 %v1127
    %v1204 = vunpack.c.h.b16 %v1127
    %v1205 = vunpack.c.l.b16 %v1128
    %v1206 = vunpack.c.h.b16 %v1128
    %v1207 = vpack.c.b16 %v1175, %v1171
    %v1208 = vpack.c.b16 %v1176, %v1172
    %v1209 = vpack.c.b16 %v1177, %v1173
    %v1210 = vpack.c.b16 %v1178, %v1174
    %v1211 = vpack.c.b16 %v1183, %v1179
    %v1212 = vpack.c.b16 %v1184, %v1180
    %v1213 = vpack.c.b16 %v1185, %v1181
    %v1214 = vpack.c.b16 %v1186, %v1182
    %v1215 = vpack.c.b16 %v1191, %v1187
    %v1216 = vpack.c.b16 %v1192, %v1188
    %v1217 = vpack.c.b16 %v1193, %v1189
    %v1218 = vpack.c.b16 %v1194, %v1190
    %v1219 = vpack.c.b16 %v1199, %v1195
    %v1220 = vpack.c.b16 %v1200, %v1196
    %v1221 = vpack.c.b16 %v1201, %v1197
    %v1222 = vpack.c.b16 %v1202, %v1198
    %v1223 = vpack.c.b16 %v1203, %v1203
    %v1224 = vpack.c.b16 %v1204, %v1204
    %v1225 = vpack.c.b16 %v1205, %v1205
    %v1226 = vpack.c.b16 %v1206, %v1206
    %v1244 = vsel %vm447, %v1145, 0
    %v1247 = vsel %vm447, %v1146, 0
    %v1250 = vsel %vm447, %v1147, 0
    %v1253 = vsel %vm447, %v1148, 0
    %v1256 = vsel %vm447, %v1149, 0
    %v1259 = vsel %vm447, %v1150, 0
    %v1262 = vsel %vm447, %v1151, 0
    %v1265 = vsel %vm447, %v1152, 0
    %v1268 = vsel %vm472, %v1223, 0
    %v1271 = vsel %vm472, %v1224, 0
    %v1274 = vsel %vm472, %v1225, 0
    %v1277 = vsel %vm472, %v1226, 0
    %1279 = vmatpush.bf16.msra.mxu0 0
    %1280 = vmatpush.bf16.msra.mxu0 0
    %1281 = vmatpush.bf16.msra.mxu0 0
    %1282 = vmatpush.bf16.msra.mxu0 %v1268
    %1283 = vmatpush.bf16.msra.mxu0 %v1219
    %1284 = vmatpush.bf16.msra.mxu0 %v1215
    %1285 = vmatpush.bf16.msra.mxu0 %v1211
    %1286 = vmatpush.bf16.msra.mxu0 %v1207
    %1287 = vmatmul.bf16.gmra.mxu0 %v1244
    %v1288 = vpop.f32.mrf.mxu0
    %v1289 = vadd.f32 0.0, %v1288
    %v1290 = vpop.f32.mrf.mxu0
    %v1291 = vadd.f32 0.0, %v1290
    %1292 = vmatmul.bf16.gmra.mxu0 %v1247
    %v1293 = vpop.f32.mrf.mxu0
    %v1294 = vadd.f32 0.0, %v1293
    %v1295 = vpop.f32.mrf.mxu0
    %v1296 = vadd.f32 0.0, %v1295
    %1297 = vmatmul.bf16.gmra.mxu0 %v1250
    %v1298 = vpop.f32.mrf.mxu0
    %v1299 = vadd.f32 0.0, %v1298
    %v1300 = vpop.f32.mrf.mxu0
    %v1301 = vadd.f32 0.0, %v1300
    %1302 = vmatmul.bf16.gmra.mxu0 %v1253
    %v1303 = vpop.f32.mrf.mxu0
    %v1304 = vadd.f32 0.0, %v1303
    %v1305 = vpop.f32.mrf.mxu0
    %v1306 = vadd.f32 0.0, %v1305
    %1307 = vmatmul.bf16.gmra.mxu0 %v1256
    %v1308 = vpop.f32.mrf.mxu0
    %v1309 = vadd.f32 0.0, %v1308
    %v1310 = vpop.f32.mrf.mxu0
    %v1311 = vadd.f32 0.0, %v1310
    %1312 = vmatmul.bf16.gmra.mxu0 %v1259
    %v1313 = vpop.f32.mrf.mxu0
    %v1314 = vadd.f32 0.0, %v1313
    %v1315 = vpop.f32.mrf.mxu0
    %v1316 = vadd.f32 0.0, %v1315
    %1317 = vmatmul.bf16.gmra.mxu0 %v1262
    %v1318 = vpop.f32.mrf.mxu0
    %v1319 = vadd.f32 0.0, %v1318
    %v1320 = vpop.f32.mrf.mxu0
    %v1321 = vadd.f32 0.0, %v1320
    %1322 = vmatmul.bf16.gmra.mxu0 %v1265
    %v1323 = vpop.f32.mrf.mxu0
    %v1324 = vadd.f32 0.0, %v1323
    %v1325 = vpop.f32.mrf.mxu0
    %v1326 = vadd.f32 0.0, %v1325
    %1327 = vdwg.mxu0
    %1328 = vmatpush.bf16.msra.mxu0 0
    %1329 = vmatpush.bf16.msra.mxu0 0
    %1330 = vmatpush.bf16.msra.mxu0 0
    %1331 = vmatpush.bf16.msra.mxu0 %v1271
    %1332 = vmatpush.bf16.msra.mxu0 %v1220
    %1333 = vmatpush.bf16.msra.mxu0 %v1216
    %1334 = vmatpush.bf16.msra.mxu0 %v1212
    %1335 = vmatpush.bf16.msra.mxu0 %v1208
    %1336 = vmatmul.bf16.gmra.mxu0 %v1244
    %v1337 = vpop.f32.mrf.mxu0
    %v1338 = vadd.f32 0.0, %v1337
    %v1339 = vpop.f32.mrf.mxu0
    %v1340 = vadd.f32 0.0, %v1339
    %1341 = vmatmul.bf16.gmra.mxu0 %v1247
    %v1342 = vpop.f32.mrf.mxu0
    %v1343 = vadd.f32 0.0, %v1342
    %v1344 = vpop.f32.mrf.mxu0
    %v1345 = vadd.f32 0.0, %v1344
    %1346 = vmatmul.bf16.gmra.mxu0 %v1250
    %v1347 = vpop.f32.mrf.mxu0
    %v1348 = vadd.f32 0.0, %v1347
    %v1349 = vpop.f32.mrf.mxu0
    %v1350 = vadd.f32 0.0, %v1349
    %1351 = vmatmul.bf16.gmra.mxu0 %v1253
    %v1352 = vpop.f32.mrf.mxu0
    %v1353 = vadd.f32 0.0, %v1352
    %v1354 = vpop.f32.mrf.mxu0
    %v1355 = vadd.f32 0.0, %v1354
    %1356 = vmatmul.bf16.gmra.mxu0 %v1256
    %v1357 = vpop.f32.mrf.mxu0
    %v1358 = vadd.f32 0.0, %v1357
    %v1359 = vpop.f32.mrf.mxu0
    %v1360 = vadd.f32 0.0, %v1359
    %1361 = vmatmul.bf16.gmra.mxu0 %v1259
    %v1362 = vpop.f32.mrf.mxu0
    %v1363 = vadd.f32 0.0, %v1362
    %v1364 = vpop.f32.mrf.mxu0
    %v1365 = vadd.f32 0.0, %v1364
    %1366 = vmatmul.bf16.gmra.mxu0 %v1262
    %v1367 = vpop.f32.mrf.mxu0
    %v1368 = vadd.f32 0.0, %v1367
    %v1369 = vpop.f32.mrf.mxu0
    %v1370 = vadd.f32 0.0, %v1369
    %1371 = vmatmul.bf16.gmra.mxu0 %v1265
    %v1372 = vpop.f32.mrf.mxu0
    %v1373 = vadd.f32 0.0, %v1372
    %v1374 = vpop.f32.mrf.mxu0
    %v1375 = vadd.f32 0.0, %v1374
    %1376 = vdwg.mxu0
    %1377 = vmatpush.bf16.msra.mxu0 0
    %1378 = vmatpush.bf16.msra.mxu0 0
    %1379 = vmatpush.bf16.msra.mxu0 0
    %1380 = vmatpush.bf16.msra.mxu0 %v1274
    %1381 = vmatpush.bf16.msra.mxu0 %v1221
    %1382 = vmatpush.bf16.msra.mxu0 %v1217
    %1383 = vmatpush.bf16.msra.mxu0 %v1213
    %1384 = vmatpush.bf16.msra.mxu0 %v1209
    %1385 = vmatmul.bf16.gmra.mxu0 %v1244
    %v1386 = vpop.f32.mrf.mxu0
    %v1387 = vadd.f32 0.0, %v1386
    %v1388 = vpop.f32.mrf.mxu0
    %v1389 = vadd.f32 0.0, %v1388
    %1390 = vmatmul.bf16.gmra.mxu0 %v1247
    %v1391 = vpop.f32.mrf.mxu0
    %v1392 = vadd.f32 0.0, %v1391
    %v1393 = vpop.f32.mrf.mxu0
    %v1394 = vadd.f32 0.0, %v1393
    %1395 = vmatmul.bf16.gmra.mxu0 %v1250
    %v1396 = vpop.f32.mrf.mxu0
    %v1397 = vadd.f32 0.0, %v1396
    %v1398 = vpop.f32.mrf.mxu0
    %v1399 = vadd.f32 0.0, %v1398
    %1400 = vmatmul.bf16.gmra.mxu0 %v1253
    %v1401 = vpop.f32.mrf.mxu0
    %v1402 = vadd.f32 0.0, %v1401
    %v1403 = vpop.f32.mrf.mxu0
    %v1404 = vadd.f32 0.0, %v1403
    %1405 = vmatmul.bf16.gmra.mxu0 %v1256
    %v1406 = vpop.f32.mrf.mxu0
    %v1407 = vadd.f32 0.0, %v1406
    %v1408 = vpop.f32.mrf.mxu0
    %v1409 = vadd.f32 0.0, %v1408
    %1410 = vmatmul.bf16.gmra.mxu0 %v1259
    %v1411 = vpop.f32.mrf.mxu0
    %v1412 = vadd.f32 0.0, %v1411
    %v1413 = vpop.f32.mrf.mxu0
    %v1414 = vadd.f32 0.0, %v1413
    %1415 = vmatmul.bf16.gmra.mxu0 %v1262
    %v1416 = vpop.f32.mrf.mxu0
    %v1417 = vadd.f32 0.0, %v1416
    %v1418 = vpop.f32.mrf.mxu0
    %v1419 = vadd.f32 0.0, %v1418
    %1420 = vmatmul.bf16.gmra.mxu0 %v1265
    %v1421 = vpop.f32.mrf.mxu0
    %v1422 = vadd.f32 0.0, %v1421
    %v1423 = vpop.f32.mrf.mxu0
    %v1424 = vadd.f32 0.0, %v1423
    %1425 = vdwg.mxu0
    %1426 = vmatpush.bf16.msra.mxu0 0
    %1427 = vmatpush.bf16.msra.mxu0 0
    %1428 = vmatpush.bf16.msra.mxu0 0
    %1429 = vmatpush.bf16.msra.mxu0 %v1277
    %1430 = vmatpush.bf16.msra.mxu0 %v1222
    %1431 = vmatpush.bf16.msra.mxu0 %v1218
    %1432 = vmatpush.bf16.msra.mxu0 %v1214
    %1433 = vmatpush.bf16.msra.mxu0 %v1210
    %1434 = vmatmul.bf16.gmra.mxu0 %v1244
    %v1435 = vpop.f32.mrf.mxu0
    %v1436 = vadd.f32 0.0, %v1435
    %v1437 = vpop.f32.mrf.mxu0
    %v1438 = vadd.f32 0.0, %v1437
    %1439 = vmatmul.bf16.gmra.mxu0 %v1247
    %v1440 = vpop.f32.mrf.mxu0
    %v1441 = vadd.f32 0.0, %v1440
    %v1442 = vpop.f32.mrf.mxu0
    %v1443 = vadd.f32 0.0, %v1442
    %1444 = vmatmul.bf16.gmra.mxu0 %v1250
    %v1445 = vpop.f32.mrf.mxu0
    %v1446 = vadd.f32 0.0, %v1445
    %v1447 = vpop.f32.mrf.mxu0
    %v1448 = vadd.f32 0.0, %v1447
    %1449 = vmatmul.bf16.gmra.mxu0 %v1253
    %v1450 = vpop.f32.mrf.mxu0
    %v1451 = vadd.f32 0.0, %v1450
    %v1452 = vpop.f32.mrf.mxu0
    %v1453 = vadd.f32 0.0, %v1452
    %1454 = vmatmul.bf16.gmra.mxu0 %v1256
    %v1455 = vpop.f32.mrf.mxu0
    %v1456 = vadd.f32 0.0, %v1455
    %v1457 = vpop.f32.mrf.mxu0
    %v1458 = vadd.f32 0.0, %v1457
    %1459 = vmatmul.bf16.gmra.mxu0 %v1259
    %v1460 = vpop.f32.mrf.mxu0
    %v1461 = vadd.f32 0.0, %v1460
    %v1462 = vpop.f32.mrf.mxu0
    %v1463 = vadd.f32 0.0, %v1462
    %1464 = vmatmul.bf16.gmra.mxu0 %v1262
    %v1465 = vpop.f32.mrf.mxu0
    %v1466 = vadd.f32 0.0, %v1465
    %v1467 = vpop.f32.mrf.mxu0
    %v1468 = vadd.f32 0.0, %v1467
    %1469 = vmatmul.bf16.gmra.mxu0 %v1265
    %v1470 = vpop.f32.mrf.mxu0
    %v1471 = vadd.f32 0.0, %v1470
    %v1472 = vpop.f32.mrf.mxu0
    %v1473 = vadd.f32 0.0, %v1472
    %1474 = vdwg.mxu0
    %v1475 = vadd.f32 %v857, %v1289
    %v1476 = vadd.f32 %v906, %v1338
    %v1477 = vadd.f32 %v955, %v1387
    %v1478 = vadd.f32 %v1004, %v1436
    %v1479 = vadd.f32 %v859, %v1291
    %v1480 = vadd.f32 %v908, %v1340
    %v1481 = vadd.f32 %v957, %v1389
    %v1482 = vadd.f32 %v1006, %v1438
    %v1483 = vadd.f32 %v862, %v1294
    %v1484 = vadd.f32 %v911, %v1343
    %v1485 = vadd.f32 %v960, %v1392
    %v1486 = vadd.f32 %v1009, %v1441
    %v1487 = vadd.f32 %v864, %v1296
    %v1488 = vadd.f32 %v913, %v1345
    %v1489 = vadd.f32 %v962, %v1394
    %v1490 = vadd.f32 %v1011, %v1443
    %v1491 = vadd.f32 %v867, %v1299
    %v1492 = vadd.f32 %v916, %v1348
    %v1493 = vadd.f32 %v965, %v1397
    %v1494 = vadd.f32 %v1014, %v1446
    %v1495 = vadd.f32 %v869, %v1301
    %v1496 = vadd.f32 %v918, %v1350
    %v1497 = vadd.f32 %v967, %v1399
    %v1498 = vadd.f32 %v1016, %v1448
    %v1499 = vadd.f32 %v872, %v1304
    %v1500 = vadd.f32 %v921, %v1353
    %v1501 = vadd.f32 %v970, %v1402
    %v1502 = vadd.f32 %v1019, %v1451
    %v1503 = vadd.f32 %v874, %v1306
    %v1504 = vadd.f32 %v923, %v1355
    %v1505 = vadd.f32 %v972, %v1404
    %v1506 = vadd.f32 %v1021, %v1453
    %v1507 = vadd.f32 %v877, %v1309
    %v1508 = vadd.f32 %v926, %v1358
    %v1509 = vadd.f32 %v975, %v1407
    %v1510 = vadd.f32 %v1024, %v1456
    %v1511 = vadd.f32 %v879, %v1311
    %v1512 = vadd.f32 %v928, %v1360
    %v1513 = vadd.f32 %v977, %v1409
    %v1514 = vadd.f32 %v1026, %v1458
    %v1515 = vadd.f32 %v882, %v1314
    %v1516 = vadd.f32 %v931, %v1363
    %v1517 = vadd.f32 %v980, %v1412
    %v1518 = vadd.f32 %v1029, %v1461
    %v1519 = vadd.f32 %v884, %v1316
    %v1520 = vadd.f32 %v933, %v1365
    %v1521 = vadd.f32 %v982, %v1414
    %v1522 = vadd.f32 %v1031, %v1463
    %v1523 = vadd.f32 %v887, %v1319
    %v1524 = vadd.f32 %v936, %v1368
    %v1525 = vadd.f32 %v985, %v1417
    %v1526 = vadd.f32 %v1034, %v1466
    %v1527 = vadd.f32 %v889, %v1321
    %v1528 = vadd.f32 %v938, %v1370
    %v1529 = vadd.f32 %v987, %v1419
    %v1530 = vadd.f32 %v1036, %v1468
    %v1531 = vadd.f32 %v892, %v1324
    %v1532 = vadd.f32 %v941, %v1373
    %v1533 = vadd.f32 %v990, %v1422
    %v1534 = vadd.f32 %v1039, %v1471
    %v1535 = vadd.f32 %v894, %v1326
    %v1536 = vadd.f32 %v943, %v1375
    %v1537 = vadd.f32 %v992, %v1424
    %v1538 = vadd.f32 %v1041, %v1473
    %v1539 = vld [vmem:[%s2] sm:$0xf]
    %v1541 = vperm.slane %v1539, 0
    %v1542 = vperm.slane %v1539, 1
    %v1543 = vperm.slane %v1539, 2
    %v1544 = vperm.slane %v1539, 3
    %v1549 = vadd.f32 %v1475, %v1541
    %v1550 = vadd.f32 %v1476, %v1542
    %v1551 = vadd.f32 %v1477, %v1543
    %v1552 = vadd.f32 %v1478, %v1544
    %v1553 = vadd.f32 %v1479, %v1541
    %v1554 = vadd.f32 %v1480, %v1542
    %v1555 = vadd.f32 %v1481, %v1543
    %v1556 = vadd.f32 %v1482, %v1544
    %v1557 = vadd.f32 %v1483, %v1541
    %v1558 = vadd.f32 %v1484, %v1542
    %v1559 = vadd.f32 %v1485, %v1543
    %v1560 = vadd.f32 %v1486, %v1544
    %v1561 = vadd.f32 %v1487, %v1541
    %v1562 = vadd.f32 %v1488, %v1542
    %v1563 = vadd.f32 %v1489, %v1543
    %v1564 = vadd.f32 %v1490, %v1544
    %v1565 = vadd.f32 %v1491, %v1541
    %v1566 = vadd.f32 %v1492, %v1542
    %v1567 = vadd.f32 %v1493, %v1543
    %v1568 = vadd.f32 %v1494, %v1544
    %v1569 = vadd.f32 %v1495, %v1541
    %v1570 = vadd.f32 %v1496, %v1542
    %v1571 = vadd.f32 %v1497, %v1543
    %v1572 = vadd.f32 %v1498, %v1544
    %v1573 = vadd.f32 %v1499, %v1541
    %v1574 = vadd.f32 %v1500, %v1542
    %v1575 = vadd.f32 %v1501, %v1543
    %v1576 = vadd.f32 %v1502, %v1544
    %v1577 = vadd.f32 %v1503, %v1541
    %v1578 = vadd.f32 %v1504, %v1542
    %v1579 = vadd.f32 %v1505, %v1543
    %v1580 = vadd.f32 %v1506, %v1544
    %v1581 = vadd.f32 %v1507, %v1541
    %v1582 = vadd.f32 %v1508, %v1542
    %v1583 = vadd.f32 %v1509, %v1543
    %v1584 = vadd.f32 %v1510, %v1544
    %v1585 = vadd.f32 %v1511, %v1541
    %v1586 = vadd.f32 %v1512, %v1542
    %v1587 = vadd.f32 %v1513, %v1543
    %v1588 = vadd.f32 %v1514, %v1544
    %v1589 = vadd.f32 %v1515, %v1541
    %v1590 = vadd.f32 %v1516, %v1542
    %v1591 = vadd.f32 %v1517, %v1543
    %v1592 = vadd.f32 %v1518, %v1544
    %v1593 = vadd.f32 %v1519, %v1541
    %v1594 = vadd.f32 %v1520, %v1542
    %v1595 = vadd.f32 %v1521, %v1543
    %v1596 = vadd.f32 %v1522, %v1544
    %v1597 = vadd.f32 %v1523, %v1541
    %v1598 = vadd.f32 %v1524, %v1542
    %v1599 = vadd.f32 %v1525, %v1543
    %v1600 = vadd.f32 %v1526, %v1544
    %v1601 = vadd.f32 %v1527, %v1541
    %v1602 = vadd.f32 %v1528, %v1542
    %v1603 = vadd.f32 %v1529, %v1543
    %v1604 = vadd.f32 %v1530, %v1544
    %v1605 = vadd.f32 %v1531, %v1541
    %v1606 = vadd.f32 %v1532, %v1542
    %v1607 = vadd.f32 %v1533, %v1543
    %v1608 = vadd.f32 %v1534, %v1544
    %v1609 = vadd.f32 %v1535, %v1541
    %v1610 = vadd.f32 %v1536, %v1542
    %v1611 = vadd.f32 %v1537, %v1543
    %v1612 = vadd.f32 %v1538, %v1544
    %v1613 = vmax.f32 %v1549, 0.0
    %v1614 = vmax.f32 %v1550, 0.0
    %v1615 = vmax.f32 %v1551, 0.0
    %v1616 = vmax.f32 %v1552, 0.0
    %v1617 = vmax.f32 %v1553, 0.0
    %v1618 = vmax.f32 %v1554, 0.0
    %v1619 = vmax.f32 %v1555, 0.0
    %v1620 = vmax.f32 %v1556, 0.0
    %v1621 = vmax.f32 %v1557, 0.0
    %v1622 = vmax.f32 %v1558, 0.0
    %v1623 = vmax.f32 %v1559, 0.0
    %v1624 = vmax.f32 %v1560, 0.0
    %v1625 = vmax.f32 %v1561, 0.0
    %v1626 = vmax.f32 %v1562, 0.0
    %v1627 = vmax.f32 %v1563, 0.0
    %v1628 = vmax.f32 %v1564, 0.0
    %v1629 = vmax.f32 %v1565, 0.0
    %v1630 = vmax.f32 %v1566, 0.0
    %v1631 = vmax.f32 %v1567, 0.0
    %v1632 = vmax.f32 %v1568, 0.0
    %v1633 = vmax.f32 %v1569, 0.0
    %v1634 = vmax.f32 %v1570, 0.0
    %v1635 = vmax.f32 %v1571, 0.0
    %v1636 = vmax.f32 %v1572, 0.0
    %v1637 = vmax.f32 %v1573, 0.0
    %v1638 = vmax.f32 %v1574, 0.0
    %v1639 = vmax.f32 %v1575, 0.0
    %v1640 = vmax.f32 %v1576, 0.0
    %v1641 = vmax.f32 %v1577, 0.0
    %v1642 = vmax.f32 %v1578, 0.0
    %v1643 = vmax.f32 %v1579, 0.0
    %v1644 = vmax.f32 %v1580, 0.0
    %v1645 = vmax.f32 %v1581, 0.0
    %v1646 = vmax.f32 %v1582, 0.0
    %v1647 = vmax.f32 %v1583, 0.0
    %v1648 = vmax.f32 %v1584, 0.0
    %v1649 = vmax.f32 %v1585, 0.0
    %v1650 = vmax.f32 %v1586, 0.0
    %v1651 = vmax.f32 %v1587, 0.0
    %v1652 = vmax.f32 %v1588, 0.0
    %v1653 = vmax.f32 %v1589, 0.0
    %v1654 = vmax.f32 %v1590, 0.0
    %v1655 = vmax.f32 %v1591, 0.0
    %v1656 = vmax.f32 %v1592, 0.0
    %v1657 = vmax.f32 %v1593, 0.0
    %v1658 = vmax.f32 %v1594, 0.0
    %v1659 = vmax.f32 %v1595, 0.0
    %v1660 = vmax.f32 %v1596, 0.0
    %v1661 = vmax.f32 %v1597, 0.0
    %v1662 = vmax.f32 %v1598, 0.0
    %v1663 = vmax.f32 %v1599, 0.0
    %v1664 = vmax.f32 %v1600, 0.0
    %v1665 = vmax.f32 %v1601, 0.0
    %v1666 = vmax.f32 %v1602, 0.0
    %v1667 = vmax.f32 %v1603, 0.0
    %v1668 = vmax.f32 %v1604, 0.0
    %v1669 = vmax.f32 %v1605, 0.0
    %v1670 = vmax.f32 %v1606, 0.0
    %v1671 = vmax.f32 %v1607, 0.0
    %v1672 = vmax.f32 %v1608, 0.0
    %v1673 = vmax.f32 %v1609, 0.0
    %v1674 = vmax.f32 %v1610, 0.0
    %v1675 = vmax.f32 %v1611, 0.0
    %v1676 = vmax.f32 %v1612, 0.0
    %v1677 = vld [vmem:[#allocation2] sm:$0xff]
    %v1678 = vld [vmem:[#allocation2 + $0x8] sm:$0xff]
    %v1679 = vld [vmem:[#allocation2 + $0x10] sm:$0xff]
    %v1680 = vld [vmem:[#allocation2 + $0x18] sm:$0xff]
    %v1681 = vadd.f32 %v1613, %v1617
    %v1682 = vrot.slane %v1681, 4
    %v1683 = vadd.f32 %v1681, %v1682
    %v1684 = vrot.slane %v1683, 2
    %v1685 = vadd.f32 %v1683, %v1684
    %v1686 = vrot.slane %v1685, 1
    %v1687 = vadd.f32 %v1685, %v1686
    %v1688 = vadd.f32 %v1614, %v1618
    %v1689 = vrot.slane %v1688, 4
    %v1690 = vadd.f32 %v1688, %v1689
    %v1691 = vrot.slane %v1690, 2
    %v1692 = vadd.f32 %v1690, %v1691
    %v1693 = vrot.slane %v1692, 1
    %v1694 = vadd.f32 %v1692, %v1693
    %v1695 = vadd.f32 %v1615, %v1619
    %v1696 = vrot.slane %v1695, 4
    %v1697 = vadd.f32 %v1695, %v1696
    %v1698 = vrot.slane %v1697, 2
    %v1699 = vadd.f32 %v1697, %v1698
    %v1700 = vrot.slane %v1699, 1
    %v1701 = vadd.f32 %v1699, %v1700
    %v1702 = vadd.f32 %v1616, %v1620
    %v1703 = vrot.slane %v1702, 4
    %v1704 = vadd.f32 %v1702, %v1703
    %v1705 = vrot.slane %v1704, 2
    %v1706 = vadd.f32 %v1704, %v1705
    %v1707 = vrot.slane %v1706, 1
    %v1708 = vadd.f32 %v1706, %v1707
    %v1709 = vadd.f32 %v1621, %v1625
    %v1710 = vrot.slane %v1709, 4
    %v1711 = vadd.f32 %v1709, %v1710
    %v1712 = vrot.slane %v1711, 2
    %v1713 = vadd.f32 %v1711, %v1712
    %v1714 = vrot.slane %v1713, 1
    %v1715 = vadd.f32 %v1713, %v1714
    %v1716 = vadd.f32 %v1622, %v1626
    %v1717 = vrot.slane %v1716, 4
    %v1718 = vadd.f32 %v1716, %v1717
    %v1719 = vrot.slane %v1718, 2
    %v1720 = vadd.f32 %v1718, %v1719
    %v1721 = vrot.slane %v1720, 1
    %v1722 = vadd.f32 %v1720, %v1721
    %v1723 = vadd.f32 %v1623, %v1627
    %v1724 = vrot.slane %v1723, 4
    %v1725 = vadd.f32 %v1723, %v1724
    %v1726 = vrot.slane %v1725, 2
    %v1727 = vadd.f32 %v1725, %v1726
    %v1728 = vrot.slane %v1727, 1
    %v1729 = vadd.f32 %v1727, %v1728
    %v1730 = vadd.f32 %v1624, %v1628
    %v1731 = vrot.slane %v1730, 4
    %v1732 = vadd.f32 %v1730, %v1731
    %v1733 = vrot.slane %v1732, 2
    %v1734 = vadd.f32 %v1732, %v1733
    %v1735 = vrot.slane %v1734, 1
    %v1736 = vadd.f32 %v1734, %v1735
    %v1737 = vadd.f32 %v1629, %v1633
    %v1738 = vrot.slane %v1737, 4
    %v1739 = vadd.f32 %v1737, %v1738
    %v1740 = vrot.slane %v1739, 2
    %v1741 = vadd.f32 %v1739, %v1740
    %v1742 = vrot.slane %v1741, 1
    %v1743 = vadd.f32 %v1741, %v1742
    %v1744 = vadd.f32 %v1630, %v1634
    %v1745 = vrot.slane %v1744, 4
    %v1746 = vadd.f32 %v1744, %v1745
    %v1747 = vrot.slane %v1746, 2
    %v1748 = vadd.f32 %v1746, %v1747
    %v1749 = vrot.slane %v1748, 1
    %v1750 = vadd.f32 %v1748, %v1749
    %v1751 = vadd.f32 %v1631, %v1635
    %v1752 = vrot.slane %v1751, 4
    %v1753 = vadd.f32 %v1751, %v1752
    %v1754 = vrot.slane %v1753, 2
    %v1755 = vadd.f32 %v1753, %v1754
    %v1756 = vrot.slane %v1755, 1
    %v1757 = vadd.f32 %v1755, %v1756
    %v1758 = vadd.f32 %v1632, %v1636
    %v1759 = vrot.slane %v1758, 4
    %v1760 = vadd.f32 %v1758, %v1759
    %v1761 = vrot.slane %v1760, 2
    %v1762 = vadd.f32 %v1760, %v1761
    %v1763 = vrot.slane %v1762, 1
    %v1764 = vadd.f32 %v1762, %v1763
    %v1765 = vadd.f32 %v1637, %v1641
    %v1766 = vrot.slane %v1765, 4
    %v1767 = vadd.f32 %v1765, %v1766
    %v1768 = vrot.slane %v1767, 2
    %v1769 = vadd.f32 %v1767, %v1768
    %v1770 = vrot.slane %v1769, 1
    %v1771 = vadd.f32 %v1769, %v1770
    %v1772 = vadd.f32 %v1638, %v1642
    %v1773 = vrot.slane %v1772, 4
    %v1774 = vadd.f32 %v1772, %v1773
    %v1775 = vrot.slane %v1774, 2
    %v1776 = vadd.f32 %v1774, %v1775
    %v1777 = vrot.slane %v1776, 1
    %v1778 = vadd.f32 %v1776, %v1777
    %v1779 = vadd.f32 %v1639, %v1643
    %v1780 = vrot.slane %v1779, 4
    %v1781 = vadd.f32 %v1779, %v1780
    %v1782 = vrot.slane %v1781, 2
    %v1783 = vadd.f32 %v1781, %v1782
    %v1784 = vrot.slane %v1783, 1
    %v1785 = vadd.f32 %v1783, %v1784
    %v1786 = vadd.f32 %v1640, %v1644
    %v1787 = vrot.slane %v1786, 4
    %v1788 = vadd.f32 %v1786, %v1787
    %v1789 = vrot.slane %v1788, 2
    %v1790 = vadd.f32 %v1788, %v1789
    %v1791 = vrot.slane %v1790, 1
    %v1792 = vadd.f32 %v1790, %v1791
    %v1793 = vadd.f32 %v1645, %v1649
    %v1794 = vrot.slane %v1793, 4
    %v1795 = vadd.f32 %v1793, %v1794
    %v1796 = vrot.slane %v1795, 2
    %v1797 = vadd.f32 %v1795, %v1796
    %v1798 = vrot.slane %v1797, 1
    %v1799 = vadd.f32 %v1797, %v1798
    %v1800 = vadd.f32 %v1646, %v1650
    %v1801 = vrot.slane %v1800, 4
    %v1802 = vadd.f32 %v1800, %v1801
    %v1803 = vrot.slane %v1802, 2
    %v1804 = vadd.f32 %v1802, %v1803
    %v1805 = vrot.slane %v1804, 1
    %v1806 = vadd.f32 %v1804, %v1805
    %v1807 = vadd.f32 %v1647, %v1651
    %v1808 = vrot.slane %v1807, 4
    %v1809 = vadd.f32 %v1807, %v1808
    %v1810 = vrot.slane %v1809, 2
    %v1811 = vadd.f32 %v1809, %v1810
    %v1812 = vrot.slane %v1811, 1
    %v1813 = vadd.f32 %v1811, %v1812
    %v1814 = vadd.f32 %v1648, %v1652
    %v1815 = vrot.slane %v1814, 4
    %v1816 = vadd.f32 %v1814, %v1815
    %v1817 = vrot.slane %v1816, 2
    %v1818 = vadd.f32 %v1816, %v1817
    %v1819 = vrot.slane %v1818, 1
    %v1820 = vadd.f32 %v1818, %v1819
    %v1821 = vadd.f32 %v1653, %v1657
    %v1822 = vrot.slane %v1821, 4
    %v1823 = vadd.f32 %v1821, %v1822
    %v1824 = vrot.slane %v1823, 2
    %v1825 = vadd.f32 %v1823, %v1824
    %v1826 = vrot.slane %v1825, 1
    %v1827 = vadd.f32 %v1825, %v1826
    %v1828 = vadd.f32 %v1654, %v1658
    %v1829 = vrot.slane %v1828, 4
    %v1830 = vadd.f32 %v1828, %v1829
    %v1831 = vrot.slane %v1830, 2
    %v1832 = vadd.f32 %v1830, %v1831
    %v1833 = vrot.slane %v1832, 1
    %v1834 = vadd.f32 %v1832, %v1833
    %v1835 = vadd.f32 %v1655, %v1659
    %v1836 = vrot.slane %v1835, 4
    %v1837 = vadd.f32 %v1835, %v1836
    %v1838 = vrot.slane %v1837, 2
    %v1839 = vadd.f32 %v1837, %v1838
    %v1840 = vrot.slane %v1839, 1
    %v1841 = vadd.f32 %v1839, %v1840
    %v1842 = vadd.f32 %v1656, %v1660
    %v1843 = vrot.slane %v1842, 4
    %v1844 = vadd.f32 %v1842, %v1843
    %v1845 = vrot.slane %v1844, 2
    %v1846 = vadd.f32 %v1844, %v1845
    %v1847 = vrot.slane %v1846, 1
    %v1848 = vadd.f32 %v1846, %v1847
    %v1849 = vadd.f32 %v1661, %v1665
    %v1850 = vrot.slane %v1849, 4
    %v1851 = vadd.f32 %v1849, %v1850
    %v1852 = vrot.slane %v1851, 2
    %v1853 = vadd.f32 %v1851, %v1852
    %v1854 = vrot.slane %v1853, 1
    %v1855 = vadd.f32 %v1853, %v1854
    %v1856 = vadd.f32 %v1662, %v1666
    %v1857 = vrot.slane %v1856, 4
    %v1858 = vadd.f32 %v1856, %v1857
    %v1859 = vrot.slane %v1858, 2
    %v1860 = vadd.f32 %v1858, %v1859
    %v1861 = vrot.slane %v1860, 1
    %v1862 = vadd.f32 %v1860, %v1861
    %v1863 = vadd.f32 %v1663, %v1667
    %v1864 = vrot.slane %v1863, 4
    %v1865 = vadd.f32 %v1863, %v1864
    %v1866 = vrot.slane %v1865, 2
    %v1867 = vadd.f32 %v1865, %v1866
    %v1868 = vrot.slane %v1867, 1
    %v1869 = vadd.f32 %v1867, %v1868
    %v1870 = vadd.f32 %v1664, %v1668
    %v1871 = vrot.slane %v1870, 4
    %v1872 = vadd.f32 %v1870, %v1871
    %v1873 = vrot.slane %v1872, 2
    %v1874 = vadd.f32 %v1872, %v1873
    %v1875 = vrot.slane %v1874, 1
    %v1876 = vadd.f32 %v1874, %v1875
    %v1877 = vadd.f32 %v1669, %v1673
    %v1878 = vrot.slane %v1877, 4
    %v1879 = vadd.f32 %v1877, %v1878
    %v1880 = vrot.slane %v1879, 2
    %v1881 = vadd.f32 %v1879, %v1880
    %v1882 = vrot.slane %v1881, 1
    %v1883 = vadd.f32 %v1881, %v1882
    %v1884 = vadd.f32 %v1670, %v1674
    %v1885 = vrot.slane %v1884, 4
    %v1886 = vadd.f32 %v1884, %v1885
    %v1887 = vrot.slane %v1886, 2
    %v1888 = vadd.f32 %v1886, %v1887
    %v1889 = vrot.slane %v1888, 1
    %v1890 = vadd.f32 %v1888, %v1889
    %v1891 = vadd.f32 %v1671, %v1675
    %v1892 = vrot.slane %v1891, 4
    %v1893 = vadd.f32 %v1891, %v1892
    %v1894 = vrot.slane %v1893, 2
    %v1895 = vadd.f32 %v1893, %v1894
    %v1896 = vrot.slane %v1895, 1
    %v1897 = vadd.f32 %v1895, %v1896
    %v1898 = vadd.f32 %v1672, %v1676
    %v1899 = vrot.slane %v1898, 4
    %v1900 = vadd.f32 %v1898, %v1899
    %v1901 = vrot.slane %v1900, 2
    %v1902 = vadd.f32 %v1900, %v1901
    %v1903 = vrot.slane %v1902, 1
    %v1904 = vadd.f32 %v1902, %v1903
    %vm1937 = vcmask 1041409
    %v1938 = vsel %vm1937, %v1715, %v1687
    %vm1939 = vcmask 1042434
    %v1940 = vsel %vm1939, %v1743, %v1938
    %vm1941 = vcmask 1043459
    %v1942 = vsel %vm1941, %v1771, %v1940
    %vm1943 = vcmask 1044484
    %v1944 = vsel %vm1943, %v1799, %v1942
    %vm1945 = vcmask 1045509
    %v1946 = vsel %vm1945, %v1827, %v1944
    %vm1947 = vcmask 1046534
    %v1948 = vsel %vm1947, %v1855, %v1946
    %vm1949 = vcmask 1047559
    %v1950 = vsel %vm1949, %v1883, %v1948
    %v1951 = vsel %vm1937, %v1722, %v1694
    %v1952 = vsel %vm1939, %v1750, %v1951
    %v1953 = vsel %vm1941, %v1778, %v1952
    %v1954 = vsel %vm1943, %v1806, %v1953
    %v1955 = vsel %vm1945, %v1834, %v1954
    %v1956 = vsel %vm1947, %v1862, %v1955
    %v1957 = vsel %vm1949, %v1890, %v1956
    %v1958 = vsel %vm1937, %v1729, %v1701
    %v1959 = vsel %vm1939, %v1757, %v1958
    %v1960 = vsel %vm1941, %v1785, %v1959
    %v1961 = vsel %vm1943, %v1813, %v1960
    %v1962 = vsel %vm1945, %v1841, %v1961
    %v1963 = vsel %vm1947, %v1869, %v1962
    %v1964 = vsel %vm1949, %v1897, %v1963
    %v1965 = vsel %vm1937, %v1736, %v1708
    %v1966 = vsel %vm1939, %v1764, %v1965
    %v1967 = vsel %vm1941, %v1792, %v1966
    %v1968 = vsel %vm1943, %v1820, %v1967
    %v1969 = vsel %vm1945, %v1848, %v1968
    %v1970 = vsel %vm1947, %v1876, %v1969
    %v1971 = vsel %vm1949, %v1904, %v1970
    %v1976 = vadd.f32 %v1677, %v1950
    %v1977 = vadd.f32 %v1678, %v1957
    %v1978 = vadd.f32 %v1679, %v1964
    %v1979 = vadd.f32 %v1680, %v1971
    %1980 = vst [vmem:[#allocation2] sm:$0xff] %v1976
    %1981 = vst [vmem:[#allocation2 + $0x8] sm:$0xff] %v1977
    %1982 = vst [vmem:[#allocation2 + $0x10] sm:$0xff] %v1978
    %1983 = vst [vmem:[#allocation2 + $0x18] sm:$0xff] %v1979
    // Predicated region
    $region54: #{tpu_custom_call.1} parent=1 // pred_check
      %p1984 = pneg %p69
    $region55: #{tpu_custom_call.1} parent=1 // pred_check_branch
      %1986 = sbr.rel (%p1984) target = $region57
    $region56: #{tpu_custom_call.1} parent=1 // pred_region
      %v1987 = vld [vmem:[#allocation2] sm:$0xff]
      %v1988 = vld [vmem:[#allocation2 + $0x8] sm:$0xff]
      %v1989 = vld [vmem:[#allocation2 + $0x10] sm:$0xff]
      %v1990 = vld [vmem:[#allocation2 + $0x18] sm:$0xff]
      %v1991 = vld [vmem:[#allocation6] sm:$0xff]
      %v1992 = vld [vmem:[#allocation6 + $0x8] sm:$0xff]
      %v1993 = vld [vmem:[#allocation6 + $0x10] sm:$0xff]
      %v1994 = vld [vmem:[#allocation6 + $0x18] sm:$0xff]
      %v1995 = vld [vmem:[#allocation6 + $0x20] sm:$0xff]
      %v1996 = vld [vmem:[#allocation6 + $0x28] sm:$0xff]
      %v1997 = vld [vmem:[#allocation6 + $0x30] sm:$0xff]
      %v1998 = vld [vmem:[#allocation6 + $0x38] sm:$0xff]
      %v1999 = vld [vmem:[#allocation6 + $0x40] sm:$0xff]
      %v2000 = vld [vmem:[#allocation6 + $0x48] sm:$0xff]
      %v2001 = vld [vmem:[#allocation6 + $0x50] sm:$0xff]
      %v2002 = vld [vmem:[#allocation6 + $0x58] sm:$0xff]
      %v2003 = vld [vmem:[#allocation6 + $0x60] sm:$0xff]
      %v2004 = vld [vmem:[#allocation6 + $0x68] sm:$0xff]
      %v2005 = vld [vmem:[#allocation6 + $0x70] sm:$0xff]
      %v2006 = vld [vmem:[#allocation6 + $0x78] sm:$0xff]
      %v2007 = vld [vmem:[#allocation6 + $0x80] sm:$0xff]
      %v2008 = vld [vmem:[#allocation6 + $0x88] sm:$0xff]
      %v2009 = vld [vmem:[#allocation6 + $0x90] sm:$0xff]
      %v2010 = vld [vmem:[#allocation6 + $0x98] sm:$0xff]
      %v2011 = vld [vmem:[#allocation6 + $0xa0] sm:$0xff]
      %v2012 = vld [vmem:[#allocation6 + $0xa8] sm:$0xff]
      %v2013 = vld [vmem:[#allocation6 + $0xb0] sm:$0xff]
      %v2014 = vld [vmem:[#allocation6 + $0xb8] sm:$0xff]
      %v2015 = vld [vmem:[#allocation6 + $0xc0] sm:$0xff]
      %v2016 = vld [vmem:[#allocation6 + $0xc8] sm:$0xff]
      %v2017 = vld [vmem:[#allocation6 + $0xd0] sm:$0xff]
      %v2018 = vld [vmem:[#allocation6 + $0xd8] sm:$0xff]
      %v2019 = vld [vmem:[#allocation6 + $0xe0] sm:$0xff]
      %v2020 = vld [vmem:[#allocation6 + $0xe8] sm:$0xff]
      %v2021 = vld [vmem:[#allocation6 + $0xf0] sm:$0xff]
      %v2022 = vld [vmem:[#allocation6 + $0xf8] sm:$0xff]
      %v2023 = vld [vmem:[#allocation6 + $0x100] sm:$0xff]
      %v2024 = vld [vmem:[#allocation6 + $0x108] sm:$0xff]
      %v2025 = vld [vmem:[#allocation6 + $0x110] sm:$0xff]
      %v2026 = vld [vmem:[#allocation6 + $0x118] sm:$0xff]
      %v2027 = vld [vmem:[#allocation6 + $0x120] sm:$0xff]
      %v2028 = vld [vmem:[#allocation6 + $0x128] sm:$0xff]
      %v2029 = vld [vmem:[#allocation6 + $0x130] sm:$0xff]
      %v2030 = vld [vmem:[#allocation6 + $0x138] sm:$0xff]
      %v2031 = vld [vmem:[#allocation6 + $0x140] sm:$0xff]
      %v2032 = vld [vmem:[#allocation6 + $0x148] sm:$0xff]
      %v2033 = vld [vmem:[#allocation6 + $0x150] sm:$0xff]
      %v2034 = vld [vmem:[#allocation6 + $0x158] sm:$0xff]
      %v2035 = vld [vmem:[#allocation6 + $0x160] sm:$0xff]
      %v2036 = vld [vmem:[#allocation6 + $0x168] sm:$0xff]
      %v2037 = vld [vmem:[#allocation6 + $0x170] sm:$0xff]
      %v2038 = vld [vmem:[#allocation6 + $0x178] sm:$0xff]
      %v2039 = vld [vmem:[#allocation6 + $0x180] sm:$0xff]
      %v2040 = vld [vmem:[#allocation6 + $0x188] sm:$0xff]
      %v2041 = vld [vmem:[#allocation6 + $0x190] sm:$0xff]
      %v2042 = vld [vmem:[#allocation6 + $0x198] sm:$0xff]
      %v2043 = vld [vmem:[#allocation6 + $0x1a0] sm:$0xff]
      %v2044 = vld [vmem:[#allocation6 + $0x1a8] sm:$0xff]
      %v2045 = vld [vmem:[#allocation6 + $0x1b0] sm:$0xff]
      %v2046 = vld [vmem:[#allocation6 + $0x1b8] sm:$0xff]
      %v2047 = vld [vmem:[#allocation6 + $0x1c0] sm:$0xff]
      %v2048 = vld [vmem:[#allocation6 + $0x1c8] sm:$0xff]
      %v2049 = vld [vmem:[#allocation6 + $0x1d0] sm:$0xff]
      %v2050 = vld [vmem:[#allocation6 + $0x1d8] sm:$0xff]
      %v2051 = vld [vmem:[#allocation6 + $0x1e0] sm:$0xff]
      %v2052 = vld [vmem:[#allocation6 + $0x1e8] sm:$0xff]
      %v2053 = vld [vmem:[#allocation6 + $0x1f0] sm:$0xff]
      %v2054 = vld [vmem:[#allocation6 + $0x1f8] sm:$0xff]
      %2055 = vmatpush.msra.mxu0 %v2006
      %2056 = vmatpush.msra.mxu0 %v2005
      %2057 = vmatpush.msra.mxu0 %v2004
      %2058 = vmatpush.msra.mxu0 %v2003
      %2059 = vmatpush.msra.mxu0 %v2002
      %2060 = vmatpush.msra.mxu0 %v2001
      %2061 = vmatpush.msra.mxu0 %v2000
      %2062 = vmatpush.msra.mxu0 %v1999
      %2063 = vmatpush.msra.mxu0 %v1998
      %2064 = vmatpush.msra.mxu0 %v1997
      %2065 = vmatpush.msra.mxu0 %v1996
      %2066 = vmatpush.msra.mxu0 %v1995
      %2067 = vmatpush.msra.mxu0 %v1994
      %2068 = vmatpush.msra.mxu0 %v1993
      %2069 = vmatpush.msra.mxu0 %v1992
      %2070 = vmatpush.msra.mxu0 %v1991
      %2071 = vmatmul.f32.gmra.mxu0 %v1987
      %v2072 = vpop.f32.mrf.mxu0
      %v2073 = vadd.f32 0.0, %v2072
      %2074 = vdwg.mxu0
      %2075 = vmatpush.msra.mxu0 %v2022
      %2076 = vmatpush.msra.mxu0 %v2021
      %2077 = vmatpush.msra.mxu0 %v2020
      %2078 = vmatpush.msra.mxu0 %v2019
      %2079 = vmatpush.msra.mxu0 %v2018
      %2080 = vmatpush.msra.mxu0 %v2017
      %2081 = vmatpush.msra.mxu0 %v2016
      %2082 = vmatpush.msra.mxu0 %v2015
      %2083 = vmatpush.msra.mxu0 %v2014
      %2084 = vmatpush.msra.mxu0 %v2013
      %2085 = vmatpush.msra.mxu0 %v2012
      %2086 = vmatpush.msra.mxu0 %v2011
      %2087 = vmatpush.msra.mxu0 %v2010
      %2088 = vmatpush.msra.mxu0 %v2009
      %2089 = vmatpush.msra.mxu0 %v2008
      %2090 = vmatpush.msra.mxu0 %v2007
      %2091 = vmatmul.f32.gmra.mxu0 %v1988
      %v2092 = vpop.f32.mrf.mxu0
      %v2093 = vadd.f32 %v2073, %v2092
      %2094 = vdwg.mxu0
      %2095 = vmatpush.msra.mxu0 %v2038
      %2096 = vmatpush.msra.mxu0 %v2037
      %2097 = vmatpush.msra.mxu0 %v2036
      %2098 = vmatpush.msra.mxu0 %v2035
      %2099 = vmatpush.msra.mxu0 %v2034
      %2100 = vmatpush.msra.mxu0 %v2033
      %2101 = vmatpush.msra.mxu0 %v2032
      %2102 = vmatpush.msra.mxu0 %v2031
      %2103 = vmatpush.msra.mxu0 %v2030
      %2104 = vmatpush.msra.mxu0 %v2029
      %2105 = vmatpush.msra.mxu0 %v2028
      %2106 = vmatpush.msra.mxu0 %v2027
      %2107 = vmatpush.msra.mxu0 %v2026
      %2108 = vmatpush.msra.mxu0 %v2025
      %2109 = vmatpush.msra.mxu0 %v2024
      %2110 = vmatpush.msra.mxu0 %v2023
      %2111 = vmatmul.f32.gmra.mxu0 %v1989
      %v2112 = vpop.f32.mrf.mxu0
      %v2113 = vadd.f32 %v2093, %v2112
      %2114 = vdwg.mxu0
      %2115 = vmatpush.msra.mxu0 %v2054
      %2116 = vmatpush.msra.mxu0 %v2053
      %2117 = vmatpush.msra.mxu0 %v2052
      %2118 = vmatpush.msra.mxu0 %v2051
      %2119 = vmatpush.msra.mxu0 %v2050
      %2120 = vmatpush.msra.mxu0 %v2049
      %2121 = vmatpush.msra.mxu0 %v2048
      %2122 = vmatpush.msra.mxu0 %v2047
      %2123 = vmatpush.msra.mxu0 %v2046
      %2124 = vmatpush.msra.mxu0 %v2045
      %2125 = vmatpush.msra.mxu0 %v2044
      %2126 = vmatpush.msra.mxu0 %v2043
      %2127 = vmatpush.msra.mxu0 %v2042
      %2128 = vmatpush.msra.mxu0 %v2041
      %2129 = vmatpush.msra.mxu0 %v2040
      %2130 = vmatpush.msra.mxu0 %v2039
      %2131 = vmatmul.f32.gmra.mxu0 %v1990
      %v2132 = vpop.f32.mrf.mxu0
      %v2133 = vadd.f32 %v2113, %v2132
      %2134 = vdwg.mxu0
      %v2135 = vmul.f32 %v2133, 0.00390625
      %v2136 = vpack.c.bf16 %v2135, %v2135
      %v2137 = vld [vmem:[%s4] sm:$0xf]
      %v2138 = vld [vmem:[%s4 + $0x4] sm:$0xf]
      %v2139 = vld [vmem:[%s4 + $0x8] sm:$0xf]
      %v2140 = vld [vmem:[%s4 + $0xc] sm:$0xf]
      %v2141 = vld [vmem:[%s4 + $0x10] sm:$0xf]
      %v2142 = vld [vmem:[%s4 + $0x14] sm:$0xf]
      %v2143 = vld [vmem:[%s4 + $0x18] sm:$0xf]
      %v2144 = vld [vmem:[%s4 + $0x1c] sm:$0xf]
      %v2145 = vld [vmem:[%s4 + $0x20] sm:$0xf]
      %v2146 = vld [vmem:[%s4 + $0x24] sm:$0xf]
      %v2147 = vld [vmem:[%s4 + $0x28] sm:$0xf]
      %v2148 = vld [vmem:[%s4 + $0x2c] sm:$0xf]
      %v2149 = vld [vmem:[%s4 + $0x30] sm:$0xf]
      %v2150 = vld [vmem:[%s4 + $0x34] sm:$0xf]
      %v2151 = vld [vmem:[%s4 + $0x38] sm:$0xf]
      %v2152 = vld [vmem:[%s4 + $0x3c] sm:$0xf]
      %v2153 = vld [vmem:[%s5] sm:$0x1]
      %v2155 = vperm.slane %v2153, 0
      %v2173 = vunpack.c.l.b16 %v2137
      %v2174 = vunpack.c.l.b16 %v2138
      %v2175 = vunpack.c.l.b16 %v2139
      %v2176 = vunpack.c.l.b16 %v2140
      %v2177 = vunpack.c.l.b16 %v2141
      %v2178 = vunpack.c.l.b16 %v2142
      %v2179 = vunpack.c.l.b16 %v2143
      %v2180 = vunpack.c.l.b16 %v2144
      %v2181 = vunpack.c.l.b16 %v2145
      %v2182 = vunpack.c.l.b16 %v2146
      %v2183 = vunpack.c.l.b16 %v2147
      %v2184 = vunpack.c.l.b16 %v2148
      %v2185 = vunpack.c.l.b16 %v2149
      %v2186 = vunpack.c.l.b16 %v2150
      %v2187 = vunpack.c.l.b16 %v2151
      %v2188 = vunpack.c.l.b16 %v2152
      %v2189 = vpack.c.b16 %v2174, %v2173
      %v2190 = vpack.c.b16 %v2176, %v2175
      %v2191 = vpack.c.b16 %v2178, %v2177
      %v2192 = vpack.c.b16 %v2180, %v2179
      %v2193 = vpack.c.b16 %v2182, %v2181
      %v2194 = vpack.c.b16 %v2184, %v2183
      %v2195 = vpack.c.b16 %v2186, %v2185
      %v2196 = vpack.c.b16 %v2188, %v2187
      %2205 = vmatpush.bf16.msra.mxu0 %v2196
      %2206 = vmatpush.bf16.msra.mxu0 %v2195
      %2207 = vmatpush.bf16.msra.mxu0 %v2194
      %2208 = vmatpush.bf16.msra.mxu0 %v2193
      %2209 = vmatpush.bf16.msra.mxu0 %v2192
      %2210 = vmatpush.bf16.msra.mxu0 %v2191
      %2211 = vmatpush.bf16.msra.mxu0 %v2190
      %2212 = vmatpush.bf16.msra.mxu0 %v2189
      %2213 = vmatmul.bf16.gmra.mxu0 %v2136
      %v2214 = vpop.f32.mrf.mxu0
      %v2215 = vadd.f32 %v2155, %v2214
      %v2216 = vpop.f32.mrf.mxu0
      %2217 = vdwg.mxu0
      %v2218 = vlaneseq
      %v2219 = vshrl.u32 %v2218, 7
      %vm2220 = vcmp.lt.s32.totalorder %v2219, 2
      %v2221 = vsel %vm2220, 1, 0
      %v2222 = vcvt.s32.f32 %v2221
      %v2223 = vmul.f32 %v2215, %v2222
      %v2224 = vrot.slane %v2223, 4
      %v2225 = vadd.f32 %v2223, %v2224
      %v2226 = vrot.slane %v2225, 2
      %v2227 = vadd.f32 %v2225, %v2226
      %v2228 = vrot.slane %v2227, 1
      %v2229 = vadd.f32 %v2227, %v2228
      %v2230 = vmul.f32 %v2229, 0.5
      %v2231 = vsub.f32 %v2215, %v2230
      %v2232 = vmul.f32 %v2231, %v2231
      %v2233 = vmul.f32 %v2232, %v2222
      %v2234 = vrot.slane %v2233, 4
      %v2235 = vadd.f32 %v2233, %v2234
      %v2236 = vrot.slane %v2235, 2
      %v2237 = vadd.f32 %v2235, %v2236
      %v2238 = vrot.slane %v2237, 1
      %v2239 = vadd.f32 %v2237, %v2238
      %v2240 = vmul.f32 %v2239, 0.5
      %v2241 = vadd.f32 %v2240, 1e-05
      %v2242 = vrsqrt.pop %v2241
      %v2243 = vmul.f32 %v2242, %v2241
      %v2244 = vmul.f32 %v2243, %v2242
      %v2245 = vmul.f32 0.5, %v2244
      %v2246 = vsub.f32 1.5, %v2245
      %v2247 = vmul.f32 %v2242, %v2246
      %vm2248 = vweird.f32 %v2241
      %vm2249 = vweird.f32 %v2242
      %vm2250 = vmor %vm2248, %vm2249
      %v2251 = vsel %vm2250, %v2242, %v2247
      %v2252 = vmul.f32 %v2231, %v2251
      %v2253 = vld [vmem:[%s6] sm:$0x1]
      %v2255 = vperm.slane %v2253, 0
      %v2257 = vmul.f32 %v2252, %v2255
      %v2258 = vld [vmem:[%s7] sm:$0x1]
      %v2260 = vperm.slane %v2258, 0
      %v2262 = vadd.f32 %v2257, %v2260
      %v2263 = vmax.f32 %v2262, 0.0
      %v2264 = vpack.c.bf16 %v2263, %v2263
      %v2265 = vld [vmem:[%s8] sm:$0xf]
      %v2266 = vld [vmem:[%s8 + $0x4] sm:$0xf]
      %v2267 = vld [vmem:[%s8 + $0x8] sm:$0xf]
      %v2268 = vld [vmem:[%s8 + $0xc] sm:$0xf]
      %v2269 = vld [vmem:[%s8 + $0x10] sm:$0xf]
      %v2270 = vld [vmem:[%s8 + $0x14] sm:$0xf]
      %v2271 = vld [vmem:[%s8 + $0x18] sm:$0xf]
      %v2272 = vld [vmem:[%s8 + $0x1c] sm:$0xf]
      %v2273 = vld [vmem:[%s8 + $0x20] sm:$0xf]
      %v2274 = vld [vmem:[%s8 + $0x24] sm:$0xf]
      %v2275 = vld [vmem:[%s8 + $0x28] sm:$0xf]
      %v2276 = vld [vmem:[%s8 + $0x2c] sm:$0xf]
      %v2277 = vld [vmem:[%s8 + $0x30] sm:$0xf]
      %v2278 = vld [vmem:[%s8 + $0x34] sm:$0xf]
      %v2279 = vld [vmem:[%s8 + $0x38] sm:$0xf]
      %v2280 = vld [vmem:[%s8 + $0x3c] sm:$0xf]
      %v2281 = vld [vmem:[%s9] sm:$0x1]
      %v2283 = vperm.slane %v2281, 0
      %v2301 = vunpack.c.l.b16 %v2265
      %v2302 = vunpack.c.l.b16 %v2266
      %v2303 = vunpack.c.l.b16 %v2267
      %v2304 = vunpack.c.l.b16 %v2268
      %v2305 = vunpack.c.l.b16 %v2269
      %v2306 = vunpack.c.l.b16 %v2270
      %v2307 = vunpack.c.l.b16 %v2271
      %v2308 = vunpack.c.l.b16 %v2272
      %v2309 = vunpack.c.l.b16 %v2273
      %v2310 = vunpack.c.l.b16 %v2274
      %v2311 = vunpack.c.l.b16 %v2275
      %v2312 = vunpack.c.l.b16 %v2276
      %v2313 = vunpack.c.l.b16 %v2277
      %v2314 = vunpack.c.l.b16 %v2278
      %v2315 = vunpack.c.l.b16 %v2279
      %v2316 = vunpack.c.l.b16 %v2280
      %v2317 = vpack.c.b16 %v2302, %v2301
      %v2318 = vpack.c.b16 %v2304, %v2303
      %v2319 = vpack.c.b16 %v2306, %v2305
      %v2320 = vpack.c.b16 %v2308, %v2307
      %v2321 = vpack.c.b16 %v2310, %v2309
      %v2322 = vpack.c.b16 %v2312, %v2311
      %v2323 = vpack.c.b16 %v2314, %v2313
      %v2324 = vpack.c.b16 %v2316, %v2315
      %2333 = vmatpush.bf16.msra.mxu0 %v2324
      %2334 = vmatpush.bf16.msra.mxu0 %v2323
      %2335 = vmatpush.bf16.msra.mxu0 %v2322
      %2336 = vmatpush.bf16.msra.mxu0 %v2321
      %2337 = vmatpush.bf16.msra.mxu0 %v2320
      %2338 = vmatpush.bf16.msra.mxu0 %v2319
      %2339 = vmatpush.bf16.msra.mxu0 %v2318
      %2340 = vmatpush.bf16.msra.mxu0 %v2317
      %2341 = vmatmul.bf16.gmra.mxu0 %v2264
      %v2342 = vpop.f32.mrf.mxu0
      %v2343 = vadd.f32 %v2283, %v2342
      %v2344 = vpop.f32.mrf.mxu0
      %2345 = vdwg.mxu0
      %2346 = vst [vmem:[#allocation8] sm:$0xff] %v2343
    $region57: #{tpu_custom_call.1} parent=1 // pred_fallthru
      _
    // Predicated region
    $region58: #{tpu_custom_call.1} parent=1 // pred_check
      _
    $region59: #{tpu_custom_call.1} parent=1 // pred_check_branch
      %2348 = sbr.rel (0) target = $region61
    $region60: #{tpu_custom_call.1} parent=1 // pred_region
      %2350 = vsyncadd [#allocation5], 0
      %s2352 = sshll.u32 [#allocation8], 4
      %s2353 = int_to_ptr.vmem [resolvable:$true] %s2352
      %s2354 = sshll.u32 %s10, 4
      %s2355 = int_to_ptr.hbm [resolvable:$true] %s2354
      %2357 = dma.vmem_to_hbm [thread:$0]  %s2353, 128, %s2355, [#allocation5]
    $region61: #{tpu_custom_call.1} parent=1 // pred_fallthru
      _
    // Predicated region
    $region62: #{tpu_custom_call.1} parent=1 // pred_check
      _
    $region63: #{tpu_custom_call.1} parent=1 // pred_check_branch
      %2359 = sbr.rel (0) target = $region65
    $region64: #{tpu_custom_call.1} parent=1 // pred_region
      %2361 = dma.done [#allocation5], 128
    $region65: #{tpu_custom_call.1} parent=1 // pred_fallthru
      _
    %2362 = vsyncpa [#allocation4], 1
    %2363 = vsyncpa [#allocation7], 1
    %2364 = vsyncpa [#allocation5], 1

</llo_original>
